<compile_context>
chip_gen: v6e
topology: v6e:2x2x1
jax: 0.10.0
libtpu: 0.0.40
codegen_flags: <defaults>
</compile_context>

<pallas_src>
import jax
import jax.numpy as jnp
from jax import lax
from jax.experimental import pallas as pl
from jax.experimental.pallas import tpu as pltpu

SEQ_FEATURES = 200  # self.input_dim * self.seq_len in the PyTorch module
BN_EPS = 1e-5


# --------------------------------------------------------------------------- #
# Kernel
# --------------------------------------------------------------------------- #
def _make_kernel(n_steps, bg):
    """Kernel for one chunk of `bg` independent sequences, `n_steps` timesteps.

    Row layout inside the chunk is time-major: row t*bg + j <-> (step t, seq j).
    """

    def kernel(x_ref, wih_t_ref, whh_t_ref, vec_ref, w1_t_ref, wmv_t_ref,
               eps_ref, out_ref, hseq_ref):
        H = whh_t_ref.shape[0]
        G = 4 * H
        L = eps_ref.shape[1]
        SEG = vec_ref.shape[1] // 5              # 128-aligned packed segments

        b_g = vec_ref[:, 0:G]                    # combined LSTM bias (g cols *2)
        gamma = vec_ref[:, SEG:SEG + H]
        beta = vec_ref[:, 2 * SEG:2 * SEG + H]
        b1 = vec_ref[:, 3 * SEG:3 * SEG + 2 * H]
        bmv = vec_ref[:, 4 * SEG:4 * SEG + 2 * L]

        # Input projection for every (step, seq) row in one MXU pass.
        gx = jnp.dot(x_ref[...], wih_t_ref[...],
                     preferred_element_type=jnp.float32) + b_g   # (n*bg, 4H)

        whh = whh_t_ref[...]                     # recurrent weights in vregs

        # ---- LSTM recurrence: fully unrolled, h/c live in vregs -----------
        # g-gate columns were pre-scaled by 2 in the wrapper, so
        # tanh(g) == 2*sigmoid(2g) - 1 comes out of the same sigmoid push
        # -> only 2 EUP pushes per serially-dependent step.
        # t = 0 peeled: h = c = 0 -> no recurrent matmul, no f*c term.
        s = jax.nn.sigmoid(gx[0:bg, :])
        c = s[:, 0:H] * (2.0 * s[:, 2 * H:3 * H] - 1.0)
        h = s[:, 3 * H:G] * jnp.tanh(c)
        hs = [h]
        for t in range(1, n_steps):
            gates = gx[t * bg:(t + 1) * bg, :] + jnp.dot(
                h, whh, preferred_element_type=jnp.float32)       # (bg, 4H)
            s = jax.nn.sigmoid(gates)                             # EUP push 1
            c = s[:, H:2 * H] * c + s[:, 0:H] * (2.0 * s[:, 2 * H:3 * H] - 1.0)
            h = s[:, 3 * H:G] * jnp.tanh(c)                       # EUP push 2
            hs.append(h)

        # ---- BatchNorm1d (training mode: stats over the time axis, which is
        #      the "batch" axis PyTorch's BatchNorm1d sees), biased variance.
        inv_n = 1.0 / n_steps
        mu = hs[0]
        for t in range(1, n_steps):
            mu = mu + hs[t]
        mu = mu * inv_n
        var = (hs[0] - mu) * (hs[0] - mu)
        for t in range(1, n_steps):
            d = hs[t] - mu
            var = var + d * d
        var = var * inv_n
        scale = lax.rsqrt(var + BN_EPS) * gamma                   # (bg, H)
        shift = beta - mu * scale                                 # (bg, H)

        # Assemble the normalized sequence as an (n*bg, H) matrix for the MXU.
        # (Single small VMEM staging buffer; the recurrence itself never
        #  touches VMEM.)
        for t in range(n_steps):
            hseq_ref[t * bg:(t + 1) * bg, :] = hs[t] * scale + shift
        hn = hseq_ref[...]                                        # (n*bg, H)

        # ---- fc1 + ReLU ----------------------------------------------------
        z1 = jnp.maximum(
            jnp.dot(hn, w1_t_ref[...], preferred_element_type=jnp.float32) + b1,
            0.0)

        # ---- fused fc_mean | fc_logvar --------------------------------------
        zmv = jnp.dot(z1, wmv_t_ref[...],
                      preferred_element_type=jnp.float32) + bmv
        zm = zmv[:, 0:L]
        zv = zmv[:, L:2 * L]

        # ---- reparameterization: z = mu + eps * exp(0.5 * logvar) -----------
        z = zm + eps_ref[...] * jnp.exp(0.5 * zv)

        # [z | z_mean | z_logvar] all land in the same VMEM output block ->
        # still one HBM writeback per chunk.
        out_ref[:, 0:L] = z
        out_ref[:, L:2 * L] = zm
        out_ref[:, 2 * L:3 * L] = zv

    return kernel


# --------------------------------------------------------------------------- #
# Wrapper-side parameter / layout plumbing
# --------------------------------------------------------------------------- #
def _pack_params(params):
    """Transpose / pre-scale / pack module parameters for the kernel."""
    f32 = jnp.float32
    H = params["w_hh"].shape[1]
    L = params["w_mean"].shape[0]
    G = 4 * H

    # tanh(x) == 2*sigmoid(2x) - 1: pre-scale the g-gate (2H:3H) columns by 2
    # so the kernel recovers tanh(g) from the single sigmoid push.
    gscale = jnp.concatenate([
        jnp.ones((2 * H,), f32), jnp.full((H,), 2.0, f32), jnp.ones((H,), f32)])

    wih_t = params["w_ih"].astype(f32).T * gscale[None, :]            # (200, 4H)
    whh_t = params["w_hh"].astype(f32).T * gscale[None, :]            # (H, 4H)
    b_g = (params["b_ih"].astype(f32) + params["b_hh"].astype(f32)) * gscale
    w1_t = params["w_fc1"].astype(f32).T                              # (H, 2H)
    wmv_t = jnp.concatenate(
        [params["w_mean"].astype(f32).T, params["w_logvar"].astype(f32).T],
        axis=1)                                                       # (2H, 2L)

    # Five 1-row vectors packed into one lane-dense slab (one DMA instead of
    # five); every segment starts on a 128-lane boundary so in-kernel slices
    # are vreg-aligned.
    seg = 128 * ((max(G, 2 * H, 2 * L) + 127) // 128)

    def pad(v):
        v = v.astype(f32)
        return jnp.pad(v, (0, seg - v.shape[0]))

    vec = jnp.concatenate([
        pad(b_g),
        pad(params["bn_gamma"]),
        pad(params["bn_beta"]),
        pad(params["b_fc1"]),
        pad(jnp.concatenate([params["b_mean"], params["b_logvar"]])),
    ]).reshape(1, 5 * seg)
    return wih_t, whh_t, vec, w1_t, wmv_t


def _choose_chunking(batch, n_steps):
    """Return (per-chunk batch bg, number of chunks).

    Two chunks when batch >= 2 so the two TensorCores of a v7x chip each take
    half (the grid axis is marked "parallel"); n_steps*bg is kept a multiple
    of 8 so the row block satisfies the sublane tiling rule."""
    if batch <= 1:
        return 1, 1
    bg = -(-batch // 2)
    while (n_steps * bg) % 8:
        bg += 1
    return bg, -(-batch // bg)


def _to_rows(a, batch_pad, bg, num_chunks, n_steps):
    # a: (batch, n_steps, D) -> (num_chunks * n_steps * bg, D),
    # chunk-major and time-major inside a chunk (row = c*n*bg + t*bg + j).
    batch, _, d = a.shape
    if batch_pad != batch:
        a = jnp.concatenate(
            [a, jnp.zeros((batch_pad - batch, n_steps, d), a.dtype)], axis=0)
    a = a.reshape(num_chunks, bg, n_steps, d).transpose(0, 2, 1, 3)
    return a.reshape(num_chunks * n_steps * bg, d)


def _from_rows(o, batch, bg, num_chunks, n_steps):
    d = o.shape[-1]
    o = o.reshape(num_chunks, n_steps, bg, d).transpose(0, 2, 1, 3)
    return o.reshape(num_chunks * bg, n_steps, d)[:batch]


def _encode_rows(x_rows, eps_rows, wih_t, whh_t, vec, w1_t, wmv_t,
                 n_steps, bg, num_chunks):
    rows = n_steps * bg
    H = whh_t.shape[0]
    L = eps_rows.shape[1]
    F = x_rows.shape[1]
    kernel = _make_kernel(n_steps, bg)
    out_shape = jax.ShapeDtypeStruct((num_chunks * rows, 3 * L), jnp.float32)
    scratch = [pltpu.VMEM((rows, H), jnp.float32)]

    if num_chunks > 1:
        # Grid over independent batch chunks; "parallel" lets the two
        # TensorCores of a v7x chip each take chunks (no effect on v5e/v6e).
        in_specs = [
            pl.BlockSpec((rows, F), lambda i: (i, 0)),
            pl.BlockSpec(wih_t.shape, lambda i: (0, 0)),
            pl.BlockSpec(whh_t.shape, lambda i: (0, 0)),
            pl.BlockSpec(vec.shape, lambda i: (0, 0)),
            pl.BlockSpec(w1_t.shape, lambda i: (0, 0)),
            pl.BlockSpec(wmv_t.shape, lambda i: (0, 0)),
            pl.BlockSpec((rows, L), lambda i: (i, 0)),
        ]
        out_specs = pl.BlockSpec((rows, 3 * L), lambda i: (i, 0))
        return pl.pallas_call(
            kernel,
            out_shape=out_shape,
            grid=(num_chunks,),
            in_specs=in_specs,
            out_specs=out_specs,
            scratch_shapes=scratch,
            compiler_params=pltpu.CompilerParams(
                dimension_semantics=("parallel",)),
        )(x_rows, wih_t, whh_t, vec, w1_t, wmv_t, eps_rows)

    # Single chunk: no grid at all -> no size-1 pipeline prologue/epilogue.
    def full(shape):
        return pl.BlockSpec(shape, lambda nd=len(shape): (0,) * nd)

    in_specs = [full(x_rows.shape), full(wih_t.shape), full(whh_t.shape),
                full(vec.shape), full(w1_t.shape), full(wmv_t.shape),
                full(eps_rows.shape)]
    return pl.pallas_call(
        kernel,
        out_shape=out_shape,
        in_specs=in_specs,
        out_specs=full((num_chunks * rows, 3 * L)),
        scratch_shapes=scratch,
    )(x_rows, wih_t, whh_t, vec, w1_t, wmv_t, eps_rows)


# --------------------------------------------------------------------------- #
# Public entry points
# --------------------------------------------------------------------------- #
@jax.jit
def timeseries_encoder2_batched(x, params, eps):
    """TimeseriesEncoder2.forward applied to a batch of independent inputs.

    x:   (B, N, ...) where each x[b] flattens to (N, 200); N acts as the
         (unbatched) LSTM sequence length, exactly as in the PyTorch module.
    eps: (B, N, latent_dim) -- the torch.randn_like noise of `sampling`.
    Returns (z, z_mean, z_logvar), each (B, N, latent_dim).
    """
    x = jnp.asarray(x, jnp.float32)
    batch, n_steps = x.shape[0], x.shape[1]
    x = x.reshape(batch, n_steps, -1)
    assert x.shape[-1] == SEQ_FEATURES
    eps = jnp.asarray(eps, jnp.float32)
    L = eps.shape[-1]
    eps = eps.reshape(batch, n_steps, L)

    bg, num_chunks = _choose_chunking(batch, n_steps)
    batch_pad = bg * num_chunks

    wih_t, whh_t, vec, w1_t, wmv_t = _pack_params(params)
    x_rows = _to_rows(x, batch_pad, bg, num_chunks, n_steps)
    eps_rows = _to_rows(eps, batch_pad, bg, num_chunks, n_steps)

    out_rows = _encode_rows(x_rows, eps_rows, wih_t, whh_t, vec, w1_t, wmv_t,
                            n_steps, bg, num_chunks)
    out = _from_rows(out_rows, batch, bg, num_chunks, n_steps)   # (B, N, 3L)
    return out[..., 0:L], out[..., L:2 * L], out[..., 2 * L:3 * L]


def timeseries_encoder2(x, params, eps):
    """Single module call (x flattens to (N, 200)), matching the PyTorch forward."""
    x = jnp.asarray(x, jnp.float32).reshape(x.shape[0], -1)      # Flatten
    z, zm, zv = timeseries_encoder2_batched(x[None], params, eps[None])
    return z[0], zm[0], zv[0]


# --------------------------------------------------------------------------- #
# Pure-JAX reference (unfused, unscaled parameters) and parameter init
# --------------------------------------------------------------------------- #
def reference(x, params, eps):
    x = x.reshape(x.shape[0], -1).astype(jnp.float32)
    H = params["w_hh"].shape[1]
    w_ih_t, w_hh_t = params["w_ih"].T, params["w_hh"].T
    b = params["b_ih"] + params["b_hh"]

    def step(carry, xt):
        h, c = carry
        gates = xt @ w_ih_t + h @ w_hh_t + b
        i = jax.nn.sigmoid(gates[0:H])
        f = jax.nn.sigmoid(gates[H:2 * H])
        g = jnp.tanh(gates[2 * H:3 * H])
        o = jax.nn.sigmoid(gates[3 * H:4 * H])
        c = f * c + i * g
        h = o * jnp.tanh(c)
        return (h, c), h

    (_, _), hs = lax.scan(step, (jnp.zeros(H), jnp.zeros(H)), x)
    mu = hs.mean(0)
    var = ((hs - mu) ** 2).mean(0)
    hn = (hs - mu) / jnp.sqrt(var + BN_EPS) * params["bn_gamma"] + params["bn_beta"]
    z1 = jnp.maximum(hn @ params["w_fc1"].T + params["b_fc1"], 0.0)
    zm = z1 @ params["w_mean"].T + params["b_mean"]
    zv = z1 @ params["w_logvar"].T + params["b_logvar"]
    return zm + eps * jnp.exp(0.5 * zv), zm, zv


def init_params(key, hidden_dim, latent_dim):
    H, L, F = hidden_dim, latent_dim, SEQ_FEATURES
    ks = jax.random.split(key, 8)
    s = 0.1
    return {
        # nn.LSTM(F, H) parameters (PyTorch shapes, gate order i,f,g,o)
        "w_ih": s * jax.random.normal(ks[0], (4 * H, F), jnp.float32),
        "w_hh": s * jax.random.normal(ks[1], (4 * H, H), jnp.float32),
        "b_ih": 0.01 * jax.random.normal(ks[2], (4 * H,), jnp.float32),
        "b_hh": 0.01 * jax.random.normal(ks[3], (4 * H,), jnp.float32),
        # BatchNorm1d(H)
        "bn_gamma": jnp.ones((H,), jnp.float32),
        "bn_beta": jnp.zeros((H,), jnp.float32),
        # fc1: H -> 2H
        "w_fc1": s * jax.random.normal(ks[4], (2 * H, H), jnp.float32),
        "b_fc1": jnp.zeros((2 * H,), jnp.float32),
        # fc_mean / fc_logvar: 2H -> L
        "w_mean": s * jax.random.normal(ks[5], (L, 2 * H), jnp.float32),
        "b_mean": jnp.zeros((L,), jnp.float32),
        "w_logvar": s * jax.random.normal(ks[6], (L, 2 * H), jnp.float32),
        "b_logvar": jnp.zeros((L,), jnp.float32),
    }


if __name__ == "__main__":
    hidden_dim, latent_dim = 32, 16
    N = 8  # flattened rows -> LSTM sequence length (PyTorch unbatched mode)

    key = jax.random.PRNGKey(0)
    kx, kp, ke, kxb, keb = jax.random.split(key, 5)
    params = init_params(kp, hidden_dim, latent_dim)

    # ---- single module call (the exact PyTorch forward); no-grid kernel path
    x = jax.random.normal(kx, (N, 1, SEQ_FEATURES), jnp.float32)
    eps = jax.random.normal(ke, (N, latent_dim), jnp.float32)
    z, z_mean, z_logvar = timeseries_encoder2(x, params, eps)
    jax.block_until_ready((z, z_mean, z_logvar))

    zr, zmr, zvr = reference(x, params, eps)
    assert jnp.allclose(z_mean, zmr, atol=1e-3, rtol=1e-3)
    assert jnp.allclose(z_logvar, zvr, atol=1e-3, rtol=1e-3)
    assert jnp.allclose(z, zr, atol=1e-3, rtol=1e-3)

    # ---- batch of independent module calls; parallel-grid (2-chunk) path ---
    B = 2
    xb = jax.random.normal(kxb, (B, N, SEQ_FEATURES), jnp.float32)
    epsb = jax.random.normal(keb, (B, N, latent_dim), jnp.float32)
    zb, zmb, zvb = timeseries_encoder2_batched(xb, params, epsb)
    jax.block_until_ready((zb, zmb, zvb))
    for b in range(B):
        zr, zmr, zvr = reference(xb[b], params, epsb[b])
        assert jnp.allclose(zmb[b], zmr, atol=1e-3, rtol=1e-3)
        assert jnp.allclose(zvb[b], zvr, atol=1e-3, rtol=1e-3)
        assert jnp.allclose(zb[b], zr, atol=1e-3, rtol=1e-3)

    print("KERNEL_OK")
</pallas_src>

<mosaic_0001>
module attributes {stable_mosaic.version = 11 : i64} {
  func.func @kernel(%arg0: memref<8x200xf32, #tpu.memory_space<vmem>>, %arg1: memref<200x128xf32, #tpu.memory_space<vmem>>, %arg2: memref<32x128xf32, #tpu.memory_space<vmem>>, %arg3: memref<1x640xf32, #tpu.memory_space<vmem>>, %arg4: memref<32x64xf32, #tpu.memory_space<vmem>>, %arg5: memref<64x32xf32, #tpu.memory_space<vmem>>, %arg6: memref<8x16xf32, #tpu.memory_space<vmem>>, %arg7: memref<8x48xf32, #tpu.memory_space<vmem>>, %arg8: memref<8x32xf32, #tpu.memory_space<vmem>>) attributes {dimension_semantics = [], scalar_prefetch = 0 : i64, scratch_operands = 1 : i64, tpu.core_type = #tpu.core_type<tc>} {
    %c0 = arith.constant 0 : index
    %c0_0 = arith.constant 0 : index
    %0 = vector.load %arg3[%c0, %c0_0] : memref<1x640xf32, #tpu.memory_space<vmem>>, vector<1x128xf32>
    %c0_1 = arith.constant 0 : index
    %c128 = arith.constant 128 : index
    %1 = vector.load %arg3[%c0_1, %c128] : memref<1x640xf32, #tpu.memory_space<vmem>>, vector<1x32xf32>
    %c0_2 = arith.constant 0 : index
    %c256 = arith.constant 256 : index
    %2 = vector.load %arg3[%c0_2, %c256] : memref<1x640xf32, #tpu.memory_space<vmem>>, vector<1x32xf32>
    %c0_3 = arith.constant 0 : index
    %c384 = arith.constant 384 : index
    %3 = vector.load %arg3[%c0_3, %c384] : memref<1x640xf32, #tpu.memory_space<vmem>>, vector<1x64xf32>
    %c0_4 = arith.constant 0 : index
    %c512 = arith.constant 512 : index
    %4 = vector.load %arg3[%c0_4, %c512] : memref<1x640xf32, #tpu.memory_space<vmem>>, vector<1x32xf32>
    %c0_5 = arith.constant 0 : index
    %c0_6 = arith.constant 0 : index
    %5 = vector.load %arg0[%c0_5, %c0_6] : memref<8x200xf32, #tpu.memory_space<vmem>>, vector<8x200xf32>
    %c0_7 = arith.constant 0 : index
    %c0_8 = arith.constant 0 : index
    %6 = vector.load %arg1[%c0_7, %c0_8] : memref<200x128xf32, #tpu.memory_space<vmem>>, vector<200x128xf32>
    %cst = arith.constant dense<0.000000e+00> : vector<8x128xf32>
    %7 = tpu.matmul %5, %6, %cst {dimension_numbers = #tpu.dot_dimension_numbers<[1], [0], [0], [1], [0, 0, 1, 1], [], []>} : vector<8x200xf32>, vector<200x128xf32>, vector<8x128xf32> -> vector<8x128xf32>
    %8 = vector.broadcast %0 : vector<1x128xf32> to vector<8x128xf32>
    %9 = arith.addf %7, %8 : vector<8x128xf32>
    %c0_9 = arith.constant 0 : index
    %c0_10 = arith.constant 0 : index
    %10 = vector.load %arg2[%c0_9, %c0_10] : memref<32x128xf32, #tpu.memory_space<vmem>>, vector<32x128xf32>
    %11 = vector.extract_strided_slice %9 {offsets = [0, 0], sizes = [1, 128], strides = [1, 1]} : vector<8x128xf32> to vector<1x128xf32>
    %12 = arith.negf %11 : vector<1x128xf32>
    %13 = math.exp %12 : vector<1x128xf32>
    %cst_11 = arith.constant 1.000000e+00 : f32
    %14 = vector.broadcast %cst_11 : f32 to vector<1x128xf32>
    %15 = arith.addf %14, %13 : vector<1x128xf32>
    %16 = arith.divf %14, %15 : vector<1x128xf32>
    %17 = vector.extract_strided_slice %16 {offsets = [0, 0], sizes = [1, 32], strides = [1, 1]} : vector<1x128xf32> to vector<1x32xf32>
    %18 = vector.extract_strided_slice %16 {offsets = [0, 64], sizes = [1, 32], strides = [1, 1]} : vector<1x128xf32> to vector<1x32xf32>
    %cst_12 = arith.constant 2.000000e+00 : f32
    %19 = vector.broadcast %cst_12 : f32 to vector<1x32xf32>
    %20 = arith.mulf %19, %18 : vector<1x32xf32>
    %cst_13 = arith.constant 1.000000e+00 : f32
    %21 = vector.broadcast %cst_13 : f32 to vector<1x32xf32>
    %22 = arith.subf %20, %21 : vector<1x32xf32>
    %23 = arith.mulf %17, %22 : vector<1x32xf32>
    %24 = vector.extract_strided_slice %16 {offsets = [0, 96], sizes = [1, 32], strides = [1, 1]} : vector<1x128xf32> to vector<1x32xf32>
    %25 = math.tanh %23 : vector<1x32xf32>
    %26 = arith.mulf %24, %25 : vector<1x32xf32>
    %27 = vector.extract_strided_slice %9 {offsets = [1, 0], sizes = [1, 128], strides = [1, 1]} : vector<8x128xf32> to vector<1x128xf32>
    %cst_14 = arith.constant dense<0.000000e+00> : vector<1x128xf32>
    %28 = tpu.matmul %26, %10, %cst_14 {dimension_numbers = #tpu.dot_dimension_numbers<[1], [0], [0], [1], [0, 0, 1, 1], [], []>} : vector<1x32xf32>, vector<32x128xf32>, vector<1x128xf32> -> vector<1x128xf32>
    %29 = arith.addf %27, %28 : vector<1x128xf32>
    %30 = arith.negf %29 : vector<1x128xf32>
    %31 = math.exp %30 : vector<1x128xf32>
    %cst_15 = arith.constant 1.000000e+00 : f32
    %32 = vector.broadcast %cst_15 : f32 to vector<1x128xf32>
    %33 = arith.addf %32, %31 : vector<1x128xf32>
    %34 = arith.divf %32, %33 : vector<1x128xf32>
    %35 = vector.extract_strided_slice %34 {offsets = [0, 32], sizes = [1, 32], strides = [1, 1]} : vector<1x128xf32> to vector<1x32xf32>
    %36 = arith.mulf %35, %23 : vector<1x32xf32>
    %37 = vector.extract_strided_slice %34 {offsets = [0, 0], sizes = [1, 32], strides = [1, 1]} : vector<1x128xf32> to vector<1x32xf32>
    %38 = vector.extract_strided_slice %34 {offsets = [0, 64], sizes = [1, 32], strides = [1, 1]} : vector<1x128xf32> to vector<1x32xf32>
    %cst_16 = arith.constant 2.000000e+00 : f32
    %39 = vector.broadcast %cst_16 : f32 to vector<1x32xf32>
    %40 = arith.mulf %39, %38 : vector<1x32xf32>
    %cst_17 = arith.constant 1.000000e+00 : f32
    %41 = vector.broadcast %cst_17 : f32 to vector<1x32xf32>
    %42 = arith.subf %40, %41 : vector<1x32xf32>
    %43 = arith.mulf %37, %42 : vector<1x32xf32>
    %44 = arith.addf %36, %43 : vector<1x32xf32>
    %45 = vector.extract_strided_slice %34 {offsets = [0, 96], sizes = [1, 32], strides = [1, 1]} : vector<1x128xf32> to vector<1x32xf32>
    %46 = math.tanh %44 : vector<1x32xf32>
    %47 = arith.mulf %45, %46 : vector<1x32xf32>
    %48 = vector.extract_strided_slice %9 {offsets = [2, 0], sizes = [1, 128], strides = [1, 1]} : vector<8x128xf32> to vector<1x128xf32>
    %cst_18 = arith.constant dense<0.000000e+00> : vector<1x128xf32>
    %49 = tpu.matmul %47, %10, %cst_18 {dimension_numbers = #tpu.dot_dimension_numbers<[1], [0], [0], [1], [0, 0, 1, 1], [], []>} : vector<1x32xf32>, vector<32x128xf32>, vector<1x128xf32> -> vector<1x128xf32>
    %50 = arith.addf %48, %49 : vector<1x128xf32>
    %51 = arith.negf %50 : vector<1x128xf32>
    %52 = math.exp %51 : vector<1x128xf32>
    %cst_19 = arith.constant 1.000000e+00 : f32
    %53 = vector.broadcast %cst_19 : f32 to vector<1x128xf32>
    %54 = arith.addf %53, %52 : vector<1x128xf32>
    %55 = arith.divf %53, %54 : vector<1x128xf32>
    %56 = vector.extract_strided_slice %55 {offsets = [0, 32], sizes = [1, 32], strides = [1, 1]} : vector<1x128xf32> to vector<1x32xf32>
    %57 = arith.mulf %56, %44 : vector<1x32xf32>
    %58 = vector.extract_strided_slice %55 {offsets = [0, 0], sizes = [1, 32], strides = [1, 1]} : vector<1x128xf32> to vector<1x32xf32>
    %59 = vector.extract_strided_slice %55 {offsets = [0, 64], sizes = [1, 32], strides = [1, 1]} : vector<1x128xf32> to vector<1x32xf32>
    %cst_20 = arith.constant 2.000000e+00 : f32
    %60 = vector.broadcast %cst_20 : f32 to vector<1x32xf32>
    %61 = arith.mulf %60, %59 : vector<1x32xf32>
    %cst_21 = arith.constant 1.000000e+00 : f32
    %62 = vector.broadcast %cst_21 : f32 to vector<1x32xf32>
    %63 = arith.subf %61, %62 : vector<1x32xf32>
    %64 = arith.mulf %58, %63 : vector<1x32xf32>
    %65 = arith.addf %57, %64 : vector<1x32xf32>
    %66 = vector.extract_strided_slice %55 {offsets = [0, 96], sizes = [1, 32], strides = [1, 1]} : vector<1x128xf32> to vector<1x32xf32>
    %67 = math.tanh %65 : vector<1x32xf32>
    %68 = arith.mulf %66, %67 : vector<1x32xf32>
    %69 = vector.extract_strided_slice %9 {offsets = [3, 0], sizes = [1, 128], strides = [1, 1]} : vector<8x128xf32> to vector<1x128xf32>
    %cst_22 = arith.constant dense<0.000000e+00> : vector<1x128xf32>
    %70 = tpu.matmul %68, %10, %cst_22 {dimension_numbers = #tpu.dot_dimension_numbers<[1], [0], [0], [1], [0, 0, 1, 1], [], []>} : vector<1x32xf32>, vector<32x128xf32>, vector<1x128xf32> -> vector<1x128xf32>
    %71 = arith.addf %69, %70 : vector<1x128xf32>
    %72 = arith.negf %71 : vector<1x128xf32>
    %73 = math.exp %72 : vector<1x128xf32>
    %cst_23 = arith.constant 1.000000e+00 : f32
    %74 = vector.broadcast %cst_23 : f32 to vector<1x128xf32>
    %75 = arith.addf %74, %73 : vector<1x128xf32>
    %76 = arith.divf %74, %75 : vector<1x128xf32>
    %77 = vector.extract_strided_slice %76 {offsets = [0, 32], sizes = [1, 32], strides = [1, 1]} : vector<1x128xf32> to vector<1x32xf32>
    %78 = arith.mulf %77, %65 : vector<1x32xf32>
    %79 = vector.extract_strided_slice %76 {offsets = [0, 0], sizes = [1, 32], strides = [1, 1]} : vector<1x128xf32> to vector<1x32xf32>
    %80 = vector.extract_strided_slice %76 {offsets = [0, 64], sizes = [1, 32], strides = [1, 1]} : vector<1x128xf32> to vector<1x32xf32>
    %cst_24 = arith.constant 2.000000e+00 : f32
    %81 = vector.broadcast %cst_24 : f32 to vector<1x32xf32>
    %82 = arith.mulf %81, %80 : vector<1x32xf32>
    %cst_25 = arith.constant 1.000000e+00 : f32
    %83 = vector.broadcast %cst_25 : f32 to vector<1x32xf32>
    %84 = arith.subf %82, %83 : vector<1x32xf32>
    %85 = arith.mulf %79, %84 : vector<1x32xf32>
    %86 = arith.addf %78, %85 : vector<1x32xf32>
    %87 = vector.extract_strided_slice %76 {offsets = [0, 96], sizes = [1, 32], strides = [1, 1]} : vector<1x128xf32> to vector<1x32xf32>
    %88 = math.tanh %86 : vector<1x32xf32>
    %89 = arith.mulf %87, %88 : vector<1x32xf32>
    %90 = vector.extract_strided_slice %9 {offsets = [4, 0], sizes = [1, 128], strides = [1, 1]} : vector<8x128xf32> to vector<1x128xf32>
    %cst_26 = arith.constant dense<0.000000e+00> : vector<1x128xf32>
    %91 = tpu.matmul %89, %10, %cst_26 {dimension_numbers = #tpu.dot_dimension_numbers<[1], [0], [0], [1], [0, 0, 1, 1], [], []>} : vector<1x32xf32>, vector<32x128xf32>, vector<1x128xf32> -> vector<1x128xf32>
    %92 = arith.addf %90, %91 : vector<1x128xf32>
    %93 = arith.negf %92 : vector<1x128xf32>
    %94 = math.exp %93 : vector<1x128xf32>
    %cst_27 = arith.constant 1.000000e+00 : f32
    %95 = vector.broadcast %cst_27 : f32 to vector<1x128xf32>
    %96 = arith.addf %95, %94 : vector<1x128xf32>
    %97 = arith.divf %95, %96 : vector<1x128xf32>
    %98 = vector.extract_strided_slice %97 {offsets = [0, 32], sizes = [1, 32], strides = [1, 1]} : vector<1x128xf32> to vector<1x32xf32>
    %99 = arith.mulf %98, %86 : vector<1x32xf32>
    %100 = vector.extract_strided_slice %97 {offsets = [0, 0], sizes = [1, 32], strides = [1, 1]} : vector<1x128xf32> to vector<1x32xf32>
    %101 = vector.extract_strided_slice %97 {offsets = [0, 64], sizes = [1, 32], strides = [1, 1]} : vector<1x128xf32> to vector<1x32xf32>
    %cst_28 = arith.constant 2.000000e+00 : f32
    %102 = vector.broadcast %cst_28 : f32 to vector<1x32xf32>
    %103 = arith.mulf %102, %101 : vector<1x32xf32>
    %cst_29 = arith.constant 1.000000e+00 : f32
    %104 = vector.broadcast %cst_29 : f32 to vector<1x32xf32>
    %105 = arith.subf %103, %104 : vector<1x32xf32>
    %106 = arith.mulf %100, %105 : vector<1x32xf32>
    %107 = arith.addf %99, %106 : vector<1x32xf32>
    %108 = vector.extract_strided_slice %97 {offsets = [0, 96], sizes = [1, 32], strides = [1, 1]} : vector<1x128xf32> to vector<1x32xf32>
    %109 = math.tanh %107 : vector<1x32xf32>
    %110 = arith.mulf %108, %109 : vector<1x32xf32>
    %111 = vector.extract_strided_slice %9 {offsets = [5, 0], sizes = [1, 128], strides = [1, 1]} : vector<8x128xf32> to vector<1x128xf32>
    %cst_30 = arith.constant dense<0.000000e+00> : vector<1x128xf32>
    %112 = tpu.matmul %110, %10, %cst_30 {dimension_numbers = #tpu.dot_dimension_numbers<[1], [0], [0], [1], [0, 0, 1, 1], [], []>} : vector<1x32xf32>, vector<32x128xf32>, vector<1x128xf32> -> vector<1x128xf32>
    %113 = arith.addf %111, %112 : vector<1x128xf32>
    %114 = arith.negf %113 : vector<1x128xf32>
    %115 = math.exp %114 : vector<1x128xf32>
    %cst_31 = arith.constant 1.000000e+00 : f32
    %116 = vector.broadcast %cst_31 : f32 to vector<1x128xf32>
    %117 = arith.addf %116, %115 : vector<1x128xf32>
    %118 = arith.divf %116, %117 : vector<1x128xf32>
    %119 = vector.extract_strided_slice %118 {offsets = [0, 32], sizes = [1, 32], strides = [1, 1]} : vector<1x128xf32> to vector<1x32xf32>
    %120 = arith.mulf %119, %107 : vector<1x32xf32>
    %121 = vector.extract_strided_slice %118 {offsets = [0, 0], sizes = [1, 32], strides = [1, 1]} : vector<1x128xf32> to vector<1x32xf32>
    %122 = vector.extract_strided_slice %118 {offsets = [0, 64], sizes = [1, 32], strides = [1, 1]} : vector<1x128xf32> to vector<1x32xf32>
    %cst_32 = arith.constant 2.000000e+00 : f32
    %123 = vector.broadcast %cst_32 : f32 to vector<1x32xf32>
    %124 = arith.mulf %123, %122 : vector<1x32xf32>
    %cst_33 = arith.constant 1.000000e+00 : f32
    %125 = vector.broadcast %cst_33 : f32 to vector<1x32xf32>
    %126 = arith.subf %124, %125 : vector<1x32xf32>
    %127 = arith.mulf %121, %126 : vector<1x32xf32>
    %128 = arith.addf %120, %127 : vector<1x32xf32>
    %129 = vector.extract_strided_slice %118 {offsets = [0, 96], sizes = [1, 32], strides = [1, 1]} : vector<1x128xf32> to vector<1x32xf32>
    %130 = math.tanh %128 : vector<1x32xf32>
    %131 = arith.mulf %129, %130 : vector<1x32xf32>
    %132 = vector.extract_strided_slice %9 {offsets = [6, 0], sizes = [1, 128], strides = [1, 1]} : vector<8x128xf32> to vector<1x128xf32>
    %cst_34 = arith.constant dense<0.000000e+00> : vector<1x128xf32>
    %133 = tpu.matmul %131, %10, %cst_34 {dimension_numbers = #tpu.dot_dimension_numbers<[1], [0], [0], [1], [0, 0, 1, 1], [], []>} : vector<1x32xf32>, vector<32x128xf32>, vector<1x128xf32> -> vector<1x128xf32>
    %134 = arith.addf %132, %133 : vector<1x128xf32>
    %135 = arith.negf %134 : vector<1x128xf32>
    %136 = math.exp %135 : vector<1x128xf32>
    %cst_35 = arith.constant 1.000000e+00 : f32
    %137 = vector.broadcast %cst_35 : f32 to vector<1x128xf32>
    %138 = arith.addf %137, %136 : vector<1x128xf32>
    %139 = arith.divf %137, %138 : vector<1x128xf32>
    %140 = vector.extract_strided_slice %139 {offsets = [0, 32], sizes = [1, 32], strides = [1, 1]} : vector<1x128xf32> to vector<1x32xf32>
    %141 = arith.mulf %140, %128 : vector<1x32xf32>
    %142 = vector.extract_strided_slice %139 {offsets = [0, 0], sizes = [1, 32], strides = [1, 1]} : vector<1x128xf32> to vector<1x32xf32>
    %143 = vector.extract_strided_slice %139 {offsets = [0, 64], sizes = [1, 32], strides = [1, 1]} : vector<1x128xf32> to vector<1x32xf32>
    %cst_36 = arith.constant 2.000000e+00 : f32
    %144 = vector.broadcast %cst_36 : f32 to vector<1x32xf32>
    %145 = arith.mulf %144, %143 : vector<1x32xf32>
    %cst_37 = arith.constant 1.000000e+00 : f32
    %146 = vector.broadcast %cst_37 : f32 to vector<1x32xf32>
    %147 = arith.subf %145, %146 : vector<1x32xf32>
    %148 = arith.mulf %142, %147 : vector<1x32xf32>
    %149 = arith.addf %141, %148 : vector<1x32xf32>
    %150 = vector.extract_strided_slice %139 {offsets = [0, 96], sizes = [1, 32], strides = [1, 1]} : vector<1x128xf32> to vector<1x32xf32>
    %151 = math.tanh %149 : vector<1x32xf32>
    %152 = arith.mulf %150, %151 : vector<1x32xf32>
    %153 = vector.extract_strided_slice %9 {offsets = [7, 0], sizes = [1, 128], strides = [1, 1]} : vector<8x128xf32> to vector<1x128xf32>
    %cst_38 = arith.constant dense<0.000000e+00> : vector<1x128xf32>
    %154 = tpu.matmul %152, %10, %cst_38 {dimension_numbers = #tpu.dot_dimension_numbers<[1], [0], [0], [1], [0, 0, 1, 1], [], []>} : vector<1x32xf32>, vector<32x128xf32>, vector<1x128xf32> -> vector<1x128xf32>
    %155 = arith.addf %153, %154 : vector<1x128xf32>
    %156 = arith.negf %155 : vector<1x128xf32>
    %157 = math.exp %156 : vector<1x128xf32>
    %cst_39 = arith.constant 1.000000e+00 : f32
    %158 = vector.broadcast %cst_39 : f32 to vector<1x128xf32>
    %159 = arith.addf %158, %157 : vector<1x128xf32>
    %160 = arith.divf %158, %159 : vector<1x128xf32>
    %161 = vector.extract_strided_slice %160 {offsets = [0, 32], sizes = [1, 32], strides = [1, 1]} : vector<1x128xf32> to vector<1x32xf32>
    %162 = arith.mulf %161, %149 : vector<1x32xf32>
    %163 = vector.extract_strided_slice %160 {offsets = [0, 0], sizes = [1, 32], strides = [1, 1]} : vector<1x128xf32> to vector<1x32xf32>
    %164 = vector.extract_strided_slice %160 {offsets = [0, 64], sizes = [1, 32], strides = [1, 1]} : vector<1x128xf32> to vector<1x32xf32>
    %cst_40 = arith.constant 2.000000e+00 : f32
    %165 = vector.broadcast %cst_40 : f32 to vector<1x32xf32>
    %166 = arith.mulf %165, %164 : vector<1x32xf32>
    %cst_41 = arith.constant 1.000000e+00 : f32
    %167 = vector.broadcast %cst_41 : f32 to vector<1x32xf32>
    %168 = arith.subf %166, %167 : vector<1x32xf32>
    %169 = arith.mulf %163, %168 : vector<1x32xf32>
    %170 = arith.addf %162, %169 : vector<1x32xf32>
    %171 = vector.extract_strided_slice %160 {offsets = [0, 96], sizes = [1, 32], strides = [1, 1]} : vector<1x128xf32> to vector<1x32xf32>
    %172 = math.tanh %170 : vector<1x32xf32>
    %173 = arith.mulf %171, %172 : vector<1x32xf32>
    %174 = arith.addf %26, %47 : vector<1x32xf32>
    %175 = arith.addf %174, %68 : vector<1x32xf32>
    %176 = arith.addf %175, %89 : vector<1x32xf32>
    %177 = arith.addf %176, %110 : vector<1x32xf32>
    %178 = arith.addf %177, %131 : vector<1x32xf32>
    %179 = arith.addf %178, %152 : vector<1x32xf32>
    %180 = arith.addf %179, %173 : vector<1x32xf32>
    %cst_42 = arith.constant 1.250000e-01 : f32
    %181 = vector.broadcast %cst_42 : f32 to vector<1x32xf32>
    %182 = arith.mulf %180, %181 : vector<1x32xf32>
    %183 = arith.subf %26, %182 : vector<1x32xf32>
    %184 = arith.subf %26, %182 : vector<1x32xf32>
    %185 = arith.mulf %183, %184 : vector<1x32xf32>
    %186 = arith.subf %47, %182 : vector<1x32xf32>
    %187 = arith.mulf %186, %186 : vector<1x32xf32>
    %188 = arith.addf %185, %187 : vector<1x32xf32>
    %189 = arith.subf %68, %182 : vector<1x32xf32>
    %190 = arith.mulf %189, %189 : vector<1x32xf32>
    %191 = arith.addf %188, %190 : vector<1x32xf32>
    %192 = arith.subf %89, %182 : vector<1x32xf32>
    %193 = arith.mulf %192, %192 : vector<1x32xf32>
    %194 = arith.addf %191, %193 : vector<1x32xf32>
    %195 = arith.subf %110, %182 : vector<1x32xf32>
    %196 = arith.mulf %195, %195 : vector<1x32xf32>
    %197 = arith.addf %194, %196 : vector<1x32xf32>
    %198 = arith.subf %131, %182 : vector<1x32xf32>
    %199 = arith.mulf %198, %198 : vector<1x32xf32>
    %200 = arith.addf %197, %199 : vector<1x32xf32>
    %201 = arith.subf %152, %182 : vector<1x32xf32>
    %202 = arith.mulf %201, %201 : vector<1x32xf32>
    %203 = arith.addf %200, %202 : vector<1x32xf32>
    %204 = arith.subf %173, %182 : vector<1x32xf32>
    %205 = arith.mulf %204, %204 : vector<1x32xf32>
    %206 = arith.addf %203, %205 : vector<1x32xf32>
    %cst_43 = arith.constant 1.250000e-01 : f32
    %207 = vector.broadcast %cst_43 : f32 to vector<1x32xf32>
    %208 = arith.mulf %206, %207 : vector<1x32xf32>
    %cst_44 = arith.constant 9.99999974E-6 : f32
    %209 = vector.broadcast %cst_44 : f32 to vector<1x32xf32>
    %210 = arith.addf %208, %209 : vector<1x32xf32>
    %211 = math.rsqrt %210 : vector<1x32xf32>
    %212 = arith.mulf %211, %1 : vector<1x32xf32>
    %213 = arith.mulf %182, %212 : vector<1x32xf32>
    %214 = arith.subf %2, %213 : vector<1x32xf32>
    %215 = arith.mulf %26, %212 : vector<1x32xf32>
    %216 = arith.addf %215, %214 : vector<1x32xf32>
    %c0_45 = arith.constant 0 : index
    %c0_46 = arith.constant 0 : index
    %217 = vector.load %arg8[%c0_45, %c0_46] : memref<8x32xf32, #tpu.memory_space<vmem>>, vector<1x32xf32>
    tpu.vector_store %arg8[%c0_45, %c0_46], %216 {strides = array<i32>} : memref<8x32xf32, #tpu.memory_space<vmem>>, vector<1x32xf32>,
    %218 = arith.mulf %47, %212 : vector<1x32xf32>
    %219 = arith.addf %218, %214 : vector<1x32xf32>
    %c1 = arith.constant 1 : index
    %c0_47 = arith.constant 0 : index
    %220 = vector.load %arg8[%c1, %c0_47] : memref<8x32xf32, #tpu.memory_space<vmem>>, vector<1x32xf32>
    tpu.vector_store %arg8[%c1, %c0_47], %219 {strides = array<i32>} : memref<8x32xf32, #tpu.memory_space<vmem>>, vector<1x32xf32>,
    %221 = arith.mulf %68, %212 : vector<1x32xf32>
    %222 = arith.addf %221, %214 : vector<1x32xf32>
    %c2 = arith.constant 2 : index
    %c0_48 = arith.constant 0 : index
    %223 = vector.load %arg8[%c2, %c0_48] : memref<8x32xf32, #tpu.memory_space<vmem>>, vector<1x32xf32>
    tpu.vector_store %arg8[%c2, %c0_48], %222 {strides = array<i32>} : memref<8x32xf32, #tpu.memory_space<vmem>>, vector<1x32xf32>,
    %224 = arith.mulf %89, %212 : vector<1x32xf32>
    %225 = arith.addf %224, %214 : vector<1x32xf32>
    %c3 = arith.constant 3 : index
    %c0_49 = arith.constant 0 : index
    %226 = vector.load %arg8[%c3, %c0_49] : memref<8x32xf32, #tpu.memory_space<vmem>>, vector<1x32xf32>
    tpu.vector_store %arg8[%c3, %c0_49], %225 {strides = array<i32>} : memref<8x32xf32, #tpu.memory_space<vmem>>, vector<1x32xf32>,
    %227 = arith.mulf %110, %212 : vector<1x32xf32>
    %228 = arith.addf %227, %214 : vector<1x32xf32>
    %c4 = arith.constant 4 : index
    %c0_50 = arith.constant 0 : index
    %229 = vector.load %arg8[%c4, %c0_50] : memref<8x32xf32, #tpu.memory_space<vmem>>, vector<1x32xf32>
    tpu.vector_store %arg8[%c4, %c0_50], %228 {strides = array<i32>} : memref<8x32xf32, #tpu.memory_space<vmem>>, vector<1x32xf32>,
    %230 = arith.mulf %131, %212 : vector<1x32xf32>
    %231 = arith.addf %230, %214 : vector<1x32xf32>
    %c5 = arith.constant 5 : index
    %c0_51 = arith.constant 0 : index
    %232 = vector.load %arg8[%c5, %c0_51] : memref<8x32xf32, #tpu.memory_space<vmem>>, vector<1x32xf32>
    tpu.vector_store %arg8[%c5, %c0_51], %231 {strides = array<i32>} : memref<8x32xf32, #tpu.memory_space<vmem>>, vector<1x32xf32>,
    %233 = arith.mulf %152, %212 : vector<1x32xf32>
    %234 = arith.addf %233, %214 : vector<1x32xf32>
    %c6 = arith.constant 6 : index
    %c0_52 = arith.constant 0 : index
    %235 = vector.load %arg8[%c6, %c0_52] : memref<8x32xf32, #tpu.memory_space<vmem>>, vector<1x32xf32>
    tpu.vector_store %arg8[%c6, %c0_52], %234 {strides = array<i32>} : memref<8x32xf32, #tpu.memory_space<vmem>>, vector<1x32xf32>,
    %236 = arith.mulf %173, %212 : vector<1x32xf32>
    %237 = arith.addf %236, %214 : vector<1x32xf32>
    %c7 = arith.constant 7 : index
    %c0_53 = arith.constant 0 : index
    %238 = vector.load %arg8[%c7, %c0_53] : memref<8x32xf32, #tpu.memory_space<vmem>>, vector<1x32xf32>
    tpu.vector_store %arg8[%c7, %c0_53], %237 {strides = array<i32>} : memref<8x32xf32, #tpu.memory_space<vmem>>, vector<1x32xf32>,
    %c0_54 = arith.constant 0 : index
    %c0_55 = arith.constant 0 : index
    %239 = vector.load %arg8[%c0_54, %c0_55] : memref<8x32xf32, #tpu.memory_space<vmem>>, vector<8x32xf32>
    %c0_56 = arith.constant 0 : index
    %c0_57 = arith.constant 0 : index
    %240 = vector.load %arg4[%c0_56, %c0_57] : memref<32x64xf32, #tpu.memory_space<vmem>>, vector<32x64xf32>
    %cst_58 = arith.constant dense<0.000000e+00> : vector<8x64xf32>
    %241 = tpu.matmul %239, %240, %cst_58 {dimension_numbers = #tpu.dot_dimension_numbers<[1], [0], [0], [1], [0, 0, 1, 1], [], []>} : vector<8x32xf32>, vector<32x64xf32>, vector<8x64xf32> -> vector<8x64xf32>
    %242 = vector.broadcast %3 : vector<1x64xf32> to vector<8x64xf32>
    %243 = arith.addf %241, %242 : vector<8x64xf32>
    %cst_59 = arith.constant 0.000000e+00 : f32
    %244 = vector.broadcast %cst_59 : f32 to vector<8x64xf32>
    %245 = arith.maximumf %243, %244 : vector<8x64xf32>
    %c0_60 = arith.constant 0 : index
    %c0_61 = arith.constant 0 : index
    %246 = vector.load %arg5[%c0_60, %c0_61] : memref<64x32xf32, #tpu.memory_space<vmem>>, vector<64x32xf32>
    %cst_62 = arith.constant dense<0.000000e+00> : vector<8x32xf32>
    %247 = tpu.matmul %245, %246, %cst_62 {dimension_numbers = #tpu.dot_dimension_numbers<[1], [0], [0], [1], [0, 0, 1, 1], [], []>} : vector<8x64xf32>, vector<64x32xf32>, vector<8x32xf32> -> vector<8x32xf32>
    %248 = vector.broadcast %4 : vector<1x32xf32> to vector<8x32xf32>
    %249 = arith.addf %247, %248 : vector<8x32xf32>
    %250 = vector.extract_strided_slice %249 {offsets = [0, 0], sizes = [8, 16], strides = [1, 1]} : vector<8x32xf32> to vector<8x16xf32>
    %251 = vector.extract_strided_slice %249 {offsets = [0, 16], sizes = [8, 16], strides = [1, 1]} : vector<8x32xf32> to vector<8x16xf32>
    %c0_63 = arith.constant 0 : index
    %c0_64 = arith.constant 0 : index
    %252 = vector.load %arg6[%c0_63, %c0_64] : memref<8x16xf32, #tpu.memory_space<vmem>>, vector<8x16xf32>
    %cst_65 = arith.constant 5.000000e-01 : f32
    %253 = vector.broadcast %cst_65 : f32 to vector<8x16xf32>
    %254 = arith.mulf %253, %251 : vector<8x16xf32>
    %255 = math.exp %254 : vector<8x16xf32>
    %256 = arith.mulf %252, %255 : vector<8x16xf32>
    %257 = arith.addf %250, %256 : vector<8x16xf32>
    %c0_66 = arith.constant 0 : index
    %c0_67 = arith.constant 0 : index
    %258 = vector.load %arg7[%c0_66, %c0_67] : memref<8x48xf32, #tpu.memory_space<vmem>>, vector<8x16xf32>
    tpu.vector_store %arg7[%c0_66, %c0_67], %257 {strides = array<i32>} : memref<8x48xf32, #tpu.memory_space<vmem>>, vector<8x16xf32>,
    %c0_68 = arith.constant 0 : index
    %c16 = arith.constant 16 : index
    %259 = vector.load %arg7[%c0_68, %c16] : memref<8x48xf32, #tpu.memory_space<vmem>>, vector<8x16xf32>
    tpu.vector_store %arg7[%c0_68, %c16], %250 {strides = array<i32>} : memref<8x48xf32, #tpu.memory_space<vmem>>, vector<8x16xf32>,
    %c0_69 = arith.constant 0 : index
    %c32 = arith.constant 32 : index
    %260 = vector.load %arg7[%c0_69, %c32] : memref<8x48xf32, #tpu.memory_space<vmem>>, vector<8x16xf32>
    tpu.vector_store %arg7[%c0_69, %c32], %251 {strides = array<i32>} : memref<8x48xf32, #tpu.memory_space<vmem>>, vector<8x16xf32>,
    return
  }
}

</mosaic_0001>

<llo_original>
// kernel: custom-call
$region0: #{custom-call}
  %s0 = inlined_call_operand.vmem [shape: f32[640], index: 0, kind: output, shape index: {}]

// kernel: timeseries_encoder2_batched.1
$region0: #{timeseries_encoder2_batched.1}
  #allocation0 [shape = 'u32[]', space=smem, size = 0x4, offset = 0x4, fixed_abs, tag = 'smem constant byte address 0x4 - core index']
  #allocation1 [shape = 'u32[144,128]{1,0:T(1,128)}', space=vmem, size = 0x12000, scoped, tag = 'internal scratch']
  #allocation2 [shape = 'f32[8,32]{1,0:T(8,128)}', space=vmem, size = 0x1000, scoped, tag = 'scratch operand']
  %s0 = inlined_call_operand.vmem [shape: f32[8,200], index: 0, kind: input, shape index: {}]
  %s1 = inlined_call_operand.vmem [shape: f32[200,128], index: 1, kind: input, shape index: {}]
  %s2 = inlined_call_operand.vmem [shape: f32[32,128], index: 2, kind: input, shape index: {}]
  %s3 = inlined_call_operand.vmem [shape: f32[1,640], index: 3, kind: input, shape index: {}]
  %s4 = inlined_call_operand.vmem [shape: f32[32,64], index: 4, kind: input, shape index: {}]
  %s5 = inlined_call_operand.vmem [shape: f32[64,32], index: 5, kind: input, shape index: {}]
  %s6 = inlined_call_operand.vmem [shape: f32[8,16], index: 6, kind: input, shape index: {}]
  %s7 = inlined_call_operand.vmem [shape: f32[8,48], index: 7, kind: output, shape index: {}]
  %s8 = sld [smem:[#allocation0]]
  $region38: #{timeseries_encoder2_batched.1} parent=0
    _
  %s10 = ssub.s32 1, %s8
  %s11 = scalar_select 0, %s10, %s8
  // Predicated region
  $region2: #{timeseries_encoder2_batched.1} parent=0 // pred_check
    _
  $region3: #{timeseries_encoder2_batched.1} parent=0 // pred_check_branch
    %13 = sbr.rel (0) target = $region5
  $region4: #{timeseries_encoder2_batched.1} parent=0 // pred_region
    _
  $region5: #{timeseries_encoder2_batched.1} parent=0 // pred_fallthru
    _
  // Predicated region
  $region6: #{timeseries_encoder2_batched.1} parent=0 // pred_check
    _
  $region7: #{timeseries_encoder2_batched.1} parent=0 // pred_check_branch
    %15 = sbr.rel (0) target = $region9
  $region8: #{timeseries_encoder2_batched.1} parent=0 // pred_region
    _
  $region9: #{timeseries_encoder2_batched.1} parent=0 // pred_fallthru
    _
  // Predicated region
  $region10: #{timeseries_encoder2_batched.1} parent=0 // pred_check
    _
  $region11: #{timeseries_encoder2_batched.1} parent=0 // pred_check_branch
    %17 = sbr.rel (0) target = $region13
  $region12: #{timeseries_encoder2_batched.1} parent=0 // pred_region
    _
  $region13: #{timeseries_encoder2_batched.1} parent=0 // pred_fallthru
    _
  // Predicated region
  $region14: #{timeseries_encoder2_batched.1} parent=0 // pred_check
    _
  $region15: #{timeseries_encoder2_batched.1} parent=0 // pred_check_branch
    %19 = sbr.rel (0) target = $region17
  $region16: #{timeseries_encoder2_batched.1} parent=0 // pred_region
    _
  $region17: #{timeseries_encoder2_batched.1} parent=0 // pred_fallthru
    _
  // Predicated region
  $region18: #{timeseries_encoder2_batched.1} parent=0 // pred_check
    _
  $region19: #{timeseries_encoder2_batched.1} parent=0 // pred_check_branch
    %21 = sbr.rel (0) target = $region21
  $region20: #{timeseries_encoder2_batched.1} parent=0 // pred_region
    _
  $region21: #{timeseries_encoder2_batched.1} parent=0 // pred_fallthru
    _
  // Predicated region
  $region22: #{timeseries_encoder2_batched.1} parent=0 // pred_check
    _
  $region23: #{timeseries_encoder2_batched.1} parent=0 // pred_check_branch
    %23 = sbr.rel (0) target = $region25
  $region24: #{timeseries_encoder2_batched.1} parent=0 // pred_region
    _
  $region25: #{timeseries_encoder2_batched.1} parent=0 // pred_fallthru
    _
  // Predicated region
  $region26: #{timeseries_encoder2_batched.1} parent=0 // pred_check
    _
  $region27: #{timeseries_encoder2_batched.1} parent=0 // pred_check_branch
    %25 = sbr.rel (0) target = $region29
  $region28: #{timeseries_encoder2_batched.1} parent=0 // pred_region
    _
  $region29: #{timeseries_encoder2_batched.1} parent=0 // pred_fallthru
    _
  %v26 = vld [vmem:[%s3] sm:$0x1]
  %v27 = vld [vmem:[%s3 + $0x1] sm:$0x1]
  %v28 = vld [vmem:[%s3 + $0x2] sm:$0x1]
  %v29 = vld [vmem:[%s3 + $0x3] sm:$0x1]
  %v30 = vld [vmem:[%s3 + $0x4] sm:$0x1]
  %v31 = vld [vmem:[%s0] sm:$0xff]
  %v32 = vld [vmem:[%s0 + $0x8] sm:$0xff]
  %v33 = vld [vmem:[%s1] sm:$0xff]
  %v34 = vld [vmem:[%s1 + $0x8] sm:$0xff]
  %v35 = vld [vmem:[%s1 + $0x10] sm:$0xff]
  %v36 = vld [vmem:[%s1 + $0x18] sm:$0xff]
  %v37 = vld [vmem:[%s1 + $0x20] sm:$0xff]
  %v38 = vld [vmem:[%s1 + $0x28] sm:$0xff]
  %v39 = vld [vmem:[%s1 + $0x30] sm:$0xff]
  %v40 = vld [vmem:[%s1 + $0x38] sm:$0xff]
  %v41 = vld [vmem:[%s1 + $0x40] sm:$0xff]
  %v42 = vld [vmem:[%s1 + $0x48] sm:$0xff]
  %v43 = vld [vmem:[%s1 + $0x50] sm:$0xff]
  %v44 = vld [vmem:[%s1 + $0x58] sm:$0xff]
  %v45 = vld [vmem:[%s1 + $0x60] sm:$0xff]
  %v46 = vld [vmem:[%s1 + $0x68] sm:$0xff]
  %v47 = vld [vmem:[%s1 + $0x70] sm:$0xff]
  %v48 = vld [vmem:[%s1 + $0x78] sm:$0xff]
  %v49 = vld [vmem:[%s1 + $0x80] sm:$0xff]
  %v50 = vld [vmem:[%s1 + $0x88] sm:$0xff]
  %v51 = vld [vmem:[%s1 + $0x90] sm:$0xff]
  %v52 = vld [vmem:[%s1 + $0x98] sm:$0xff]
  %v53 = vld [vmem:[%s1 + $0xa0] sm:$0xff]
  %v54 = vld [vmem:[%s1 + $0xa8] sm:$0xff]
  %v55 = vld [vmem:[%s1 + $0xb0] sm:$0xff]
  %v56 = vld [vmem:[%s1 + $0xb8] sm:$0xff]
  %v57 = vld [vmem:[%s1 + $0xc0] sm:$0xff]
  %v59 = vlaneseq
  %v60 = vshrl.u32 %v59, 7
  %v61 = vsub.s32 0, %v60
  %v62 = vrot.slane %v26, %v61
  %vm64 = vcmask 588800
  %v66 = vsel %vm64, %v32, 0
  %68 = vmatprep.subr.mxu0 0.0
  %69 = vmatpush1.msra.mxu0 %v48
  %70 = vmatprep.subr.mxu0 0.0
  %71 = vmatpush1.msra.mxu0 %v47
  %72 = vmatprep.subr.mxu0 0.0
  %73 = vmatpush1.msra.mxu0 %v46
  %74 = vmatprep.subr.mxu0 0.0
  %75 = vmatpush1.msra.mxu0 %v45
  %76 = vmatprep.subr.mxu0 0.0
  %77 = vmatpush1.msra.mxu0 %v44
  %78 = vmatprep.subr.mxu0 0.0
  %79 = vmatpush1.msra.mxu0 %v43
  %80 = vmatprep.subr.mxu0 0.0
  %81 = vmatpush1.msra.mxu0 %v42
  %82 = vmatprep.subr.mxu0 0.0
  %83 = vmatpush1.msra.mxu0 %v41
  %84 = vmatprep.subr.mxu0 0.0
  %85 = vmatpush1.msra.mxu0 %v40
  %86 = vmatprep.subr.mxu0 0.0
  %87 = vmatpush1.msra.mxu0 %v39
  %88 = vmatprep.subr.mxu0 0.0
  %89 = vmatpush1.msra.mxu0 %v38
  %90 = vmatprep.subr.mxu0 0.0
  %91 = vmatpush1.msra.mxu0 %v37
  %92 = vmatprep.subr.mxu0 0.0
  %93 = vmatpush1.msra.mxu0 %v36
  %94 = vmatprep.subr.mxu0 0.0
  %95 = vmatpush1.msra.mxu0 %v35
  %96 = vmatprep.subr.mxu0 0.0
  %97 = vmatpush1.msra.mxu0 %v34
  %98 = vmatprep.subr.mxu0 0.0
  %99 = vmatpush1.msra.mxu0 %v33
  %100 = vmatprep.subr.mxu0 0.0
  %101 = vmatpush2.msra.mxu0 0.0
  %102 = vmatprep.subr.mxu0 0.0
  %103 = vmatpush2.msra.mxu0 0.0
  %104 = vmatprep.subr.mxu0 0.0
  %105 = vmatpush2.msra.mxu0 0.0
  %106 = vmatprep.subr.mxu0 0.0
  %107 = vmatpush2.msra.mxu0 0.0
  %108 = vmatprep.subr.mxu0 0.0
  %109 = vmatpush2.msra.mxu0 0.0
  %110 = vmatprep.subr.mxu0 0.0
  %111 = vmatpush2.msra.mxu0 0.0
  %112 = vmatprep.subr.mxu0 0.0
  %113 = vmatpush2.msra.mxu0 0.0
  %114 = vmatprep.subr.mxu0 0.0
  %115 = vmatpush2.msra.mxu0 %v57
  %116 = vmatprep.subr.mxu0 0.0
  %117 = vmatpush2.msra.mxu0 %v56
  %118 = vmatprep.subr.mxu0 0.0
  %119 = vmatpush2.msra.mxu0 %v55
  %120 = vmatprep.subr.mxu0 0.0
  %121 = vmatpush2.msra.mxu0 %v54
  %122 = vmatprep.subr.mxu0 0.0
  %123 = vmatpush2.msra.mxu0 %v53
  %124 = vmatprep.subr.mxu0 0.0
  %125 = vmatpush2.msra.mxu0 %v52
  %126 = vmatprep.subr.mxu0 0.0
  %127 = vmatpush2.msra.mxu0 %v51
  %128 = vmatprep.subr.mxu0 0.0
  %129 = vmatpush2.msra.mxu0 %v50
  %130 = vmatprep.subr.mxu0 0.0
  %131 = vmatpush2.msra.mxu0 %v49
  %132 = vmatprep.mubr.f32.mxu0 %v66
  %133 = vmatmul.mubr.f32.gmra.mxu0 %v31
  %v134 = vpop.f32.mrf.mxu0
  %v135 = vadd.f32 %v62, %v134
  %v136 = vpop.f32.mrf.mxu0
  %137 = vdwg.mxu0
  %v138 = vld [vmem:[%s2] sm:$0xff]
  %v139 = vld [vmem:[%s2 + $0x8] sm:$0xff]
  %v140 = vld [vmem:[%s2 + $0x10] sm:$0xff]
  %v141 = vld [vmem:[%s2 + $0x18] sm:$0xff]
  %v142 = vxor.u32 %v135, 2147483648
  %v143 = vmul.f32 %v142, 1.442695
  %v144 = vpow.pop %v143
  %v145 = vadd.f32 %v144, 1.0
  %v146 = vrcp.pop %v145
  %v147 = vmul.f32 1.0, %v146
  %v148 = vmul.f32 %v147, 2.0
  %v149 = vsub.f32 %v148, 1.0
  %151 = vrot.lane.b32.xlu0 %v149, 64
  %v152 = vpop.permute.xlu0 %151
  %v154 = vmul.f32 %v147, %v152
  %v155 = vtanh.pop %v154
  %157 = vrot.lane.b32.xlu0 %v155, 96
  %v158 = vpop.permute.xlu0 %157
  %v160 = vmul.f32 %v147, %v158
  %162 = vrot.lane.b32.xlu0 %v160, 32
  %v163 = vpop.permute.xlu0 %162
  %vm164 = vcmask 261120
  %v165 = vsel %vm164, %v163, 0
  %167 = vmatprep.subr.mxu0 0.0
  %168 = vmatpush1.msra.mxu0 0.0
  %169 = vmatprep.subr.mxu0 0.0
  %170 = vmatpush1.msra.mxu0 0.0
  %171 = vmatprep.subr.mxu0 0.0
  %172 = vmatpush1.msra.mxu0 0.0
  %173 = vmatprep.subr.mxu0 0.0
  %174 = vmatpush1.msra.mxu0 0.0
  %175 = vmatprep.subr.mxu0 0.0
  %176 = vmatpush1.msra.mxu0 0.0
  %177 = vmatprep.subr.mxu0 0.0
  %178 = vmatpush1.msra.mxu0 0.0
  %179 = vmatprep.subr.mxu0 0.0
  %180 = vmatpush1.msra.mxu0 0.0
  %181 = vmatprep.subr.mxu0 0.0
  %182 = vmatpush1.msra.mxu0 0.0
  %183 = vmatprep.subr.mxu0 0.0
  %184 = vmatpush1.msra.mxu0 0.0
  %185 = vmatprep.subr.mxu0 0.0
  %186 = vmatpush1.msra.mxu0 0.0
  %187 = vmatprep.subr.mxu0 0.0
  %188 = vmatpush1.msra.mxu0 0.0
  %189 = vmatprep.subr.mxu0 0.0
  %190 = vmatpush1.msra.mxu0 0.0
  %191 = vmatprep.subr.mxu0 0.0
  %192 = vmatpush1.msra.mxu0 %v141
  %193 = vmatprep.subr.mxu0 0.0
  %194 = vmatpush1.msra.mxu0 %v140
  %195 = vmatprep.subr.mxu0 0.0
  %196 = vmatpush1.msra.mxu0 %v139
  %197 = vmatprep.subr.mxu0 0.0
  %198 = vmatpush1.msra.mxu0 %v138
  %199 = vmatprep.subr.mxu0 0.0
  %200 = vmatpush2.msra.mxu0 0.0
  %201 = vmatprep.subr.mxu0 0.0
  %202 = vmatpush2.msra.mxu0 0.0
  %203 = vmatprep.subr.mxu0 0.0
  %204 = vmatpush2.msra.mxu0 0.0
  %205 = vmatprep.subr.mxu0 0.0
  %206 = vmatpush2.msra.mxu0 0.0
  %207 = vmatprep.subr.mxu0 0.0
  %208 = vmatpush2.msra.mxu0 0.0
  %209 = vmatprep.subr.mxu0 0.0
  %210 = vmatpush2.msra.mxu0 0.0
  %211 = vmatprep.subr.mxu0 0.0
  %212 = vmatpush2.msra.mxu0 0.0
  %213 = vmatprep.subr.mxu0 0.0
  %214 = vmatpush2.msra.mxu0 0.0
  %215 = vmatprep.subr.mxu0 0.0
  %216 = vmatpush2.msra.mxu0 0.0
  %217 = vmatprep.subr.mxu0 0.0
  %218 = vmatpush2.msra.mxu0 0.0
  %219 = vmatprep.subr.mxu0 0.0
  %220 = vmatpush2.msra.mxu0 0.0
  %221 = vmatprep.subr.mxu0 0.0
  %222 = vmatpush2.msra.mxu0 0.0
  %223 = vmatprep.subr.mxu0 0.0
  %224 = vmatpush2.msra.mxu0 0.0
  %225 = vmatprep.subr.mxu0 0.0
  %226 = vmatpush2.msra.mxu0 0.0
  %227 = vmatprep.subr.mxu0 0.0
  %228 = vmatpush2.msra.mxu0 0.0
  %229 = vmatprep.subr.mxu0 0.0
  %230 = vmatpush2.msra.mxu0 0.0
  %231 = vmatprep.mubr.f32.mxu0 0.0
  %232 = vmatmul.mubr.f32.gmra.mxu0 %v165
  %v233 = vpop.f32.mrf.mxu0
  %v234 = vadd.f32 0.0, %v233
  %v235 = vpop.f32.mrf.mxu0
  %236 = vdwg.mxu0
  %v238 = vrot.slane %v234, 7
  %v240 = vadd.f32 %v135, %v238
  %v241 = vxor.u32 %v240, 2147483648
  %v242 = vmul.f32 %v241, 1.442695
  %v243 = vpow.pop %v242
  %v244 = vadd.f32 %v243, 1.0
  %v245 = vrcp.pop %v244
  %v246 = vmul.f32 1.0, %v245
  %v248 = vrot.slane %v154, 7
  %249 = vrot.lane.b32.xlu0 %v248, 32
  %v250 = vpop.permute.xlu0 %249
  %v252 = vmul.f32 %v246, %v250
  %v253 = vmul.f32 %v246, 2.0
  %v254 = vsub.f32 %v253, 1.0
  %256 = vrot.lane.b32.xlu0 %v254, 64
  %v257 = vpop.permute.xlu0 %256
  %v259 = vmul.f32 %v246, %v257
  %261 = vrot.lane.b32.xlu0 %v259, 32
  %v262 = vpop.permute.xlu0 %261
  %v264 = vadd.f32 %v252, %v262
  %v265 = vtanh.pop %v264
  %267 = vrot.lane.b32.xlu0 %v265, 64
  %v268 = vpop.permute.xlu0 %267
  %v270 = vmul.f32 %v246, %v268
  %v272 = vrot.slane %v270, 1
  %273 = vrot.lane.b32.xlu0 %v272, 32
  %v274 = vpop.permute.xlu0 %273
  %v275 = vsel %vm164, %v274, 0
  %277 = vmatprep.subr.mxu0 0.0
  %278 = vmatpush1.msra.mxu0 0.0
  %279 = vmatprep.subr.mxu0 0.0
  %280 = vmatpush1.msra.mxu0 0.0
  %281 = vmatprep.subr.mxu0 0.0
  %282 = vmatpush1.msra.mxu0 0.0
  %283 = vmatprep.subr.mxu0 0.0
  %284 = vmatpush1.msra.mxu0 0.0
  %285 = vmatprep.subr.mxu0 0.0
  %286 = vmatpush1.msra.mxu0 0.0
  %287 = vmatprep.subr.mxu0 0.0
  %288 = vmatpush1.msra.mxu0 0.0
  %289 = vmatprep.subr.mxu0 0.0
  %290 = vmatpush1.msra.mxu0 0.0
  %291 = vmatprep.subr.mxu0 0.0
  %292 = vmatpush1.msra.mxu0 0.0
  %293 = vmatprep.subr.mxu0 0.0
  %294 = vmatpush1.msra.mxu0 0.0
  %295 = vmatprep.subr.mxu0 0.0
  %296 = vmatpush1.msra.mxu0 0.0
  %297 = vmatprep.subr.mxu0 0.0
  %298 = vmatpush1.msra.mxu0 0.0
  %299 = vmatprep.subr.mxu0 0.0
  %300 = vmatpush1.msra.mxu0 0.0
  %301 = vmatprep.subr.mxu0 0.0
  %302 = vmatpush1.msra.mxu0 %v141
  %303 = vmatprep.subr.mxu0 0.0
  %304 = vmatpush1.msra.mxu0 %v140
  %305 = vmatprep.subr.mxu0 0.0
  %306 = vmatpush1.msra.mxu0 %v139
  %307 = vmatprep.subr.mxu0 0.0
  %308 = vmatpush1.msra.mxu0 %v138
  %309 = vmatprep.subr.mxu0 0.0
  %310 = vmatpush2.msra.mxu0 0.0
  %311 = vmatprep.subr.mxu0 0.0
  %312 = vmatpush2.msra.mxu0 0.0
  %313 = vmatprep.subr.mxu0 0.0
  %314 = vmatpush2.msra.mxu0 0.0
  %315 = vmatprep.subr.mxu0 0.0
  %316 = vmatpush2.msra.mxu0 0.0
  %317 = vmatprep.subr.mxu0 0.0
  %318 = vmatpush2.msra.mxu0 0.0
  %319 = vmatprep.subr.mxu0 0.0
  %320 = vmatpush2.msra.mxu0 0.0
  %321 = vmatprep.subr.mxu0 0.0
  %322 = vmatpush2.msra.mxu0 0.0
  %323 = vmatprep.subr.mxu0 0.0
  %324 = vmatpush2.msra.mxu0 0.0
  %325 = vmatprep.subr.mxu0 0.0
  %326 = vmatpush2.msra.mxu0 0.0
  %327 = vmatprep.subr.mxu0 0.0
  %328 = vmatpush2.msra.mxu0 0.0
  %329 = vmatprep.subr.mxu0 0.0
  %330 = vmatpush2.msra.mxu0 0.0
  %331 = vmatprep.subr.mxu0 0.0
  %332 = vmatpush2.msra.mxu0 0.0
  %333 = vmatprep.subr.mxu0 0.0
  %334 = vmatpush2.msra.mxu0 0.0
  %335 = vmatprep.subr.mxu0 0.0
  %336 = vmatpush2.msra.mxu0 0.0
  %337 = vmatprep.subr.mxu0 0.0
  %338 = vmatpush2.msra.mxu0 0.0
  %339 = vmatprep.subr.mxu0 0.0
  %340 = vmatpush2.msra.mxu0 0.0
  %341 = vmatprep.mubr.f32.mxu0 0.0
  %342 = vmatmul.mubr.f32.gmra.mxu0 %v275
  %v343 = vpop.f32.mrf.mxu0
  %v344 = vadd.f32 0.0, %v343
  %v345 = vpop.f32.mrf.mxu0
  %346 = vdwg.mxu0
  %v348 = vrot.slane %v344, 6
  %v350 = vadd.f32 %v135, %v348
  %v351 = vxor.u32 %v350, 2147483648
  %v352 = vmul.f32 %v351, 1.442695
  %v353 = vpow.pop %v352
  %v354 = vadd.f32 %v353, 1.0
  %v355 = vrcp.pop %v354
  %v356 = vmul.f32 1.0, %v355
  %v358 = vrot.slane %v264, 7
  %v360 = vmul.f32 %v356, %v358
  %v361 = vmul.f32 %v356, 2.0
  %v362 = vsub.f32 %v361, 1.0
  %364 = vrot.lane.b32.xlu0 %v362, 64
  %v365 = vpop.permute.xlu0 %364
  %v367 = vmul.f32 %v356, %v365
  %369 = vrot.lane.b32.xlu0 %v367, 32
  %v370 = vpop.permute.xlu0 %369
  %v372 = vadd.f32 %v360, %v370
  %v373 = vtanh.pop %v372
  %375 = vrot.lane.b32.xlu0 %v373, 64
  %v376 = vpop.permute.xlu0 %375
  %v378 = vmul.f32 %v356, %v376
  %v380 = vrot.slane %v378, 2
  %381 = vrot.lane.b32.xlu0 %v380, 32
  %v382 = vpop.permute.xlu0 %381
  %v383 = vsel %vm164, %v382, 0
  %385 = vmatprep.subr.mxu0 0.0
  %386 = vmatpush1.msra.mxu0 0.0
  %387 = vmatprep.subr.mxu0 0.0
  %388 = vmatpush1.msra.mxu0 0.0
  %389 = vmatprep.subr.mxu0 0.0
  %390 = vmatpush1.msra.mxu0 0.0
  %391 = vmatprep.subr.mxu0 0.0
  %392 = vmatpush1.msra.mxu0 0.0
  %393 = vmatprep.subr.mxu0 0.0
  %394 = vmatpush1.msra.mxu0 0.0
  %395 = vmatprep.subr.mxu0 0.0
  %396 = vmatpush1.msra.mxu0 0.0
  %397 = vmatprep.subr.mxu0 0.0
  %398 = vmatpush1.msra.mxu0 0.0
  %399 = vmatprep.subr.mxu0 0.0
  %400 = vmatpush1.msra.mxu0 0.0
  %401 = vmatprep.subr.mxu0 0.0
  %402 = vmatpush1.msra.mxu0 0.0
  %403 = vmatprep.subr.mxu0 0.0
  %404 = vmatpush1.msra.mxu0 0.0
  %405 = vmatprep.subr.mxu0 0.0
  %406 = vmatpush1.msra.mxu0 0.0
  %407 = vmatprep.subr.mxu0 0.0
  %408 = vmatpush1.msra.mxu0 0.0
  %409 = vmatprep.subr.mxu0 0.0
  %410 = vmatpush1.msra.mxu0 %v141
  %411 = vmatprep.subr.mxu0 0.0
  %412 = vmatpush1.msra.mxu0 %v140
  %413 = vmatprep.subr.mxu0 0.0
  %414 = vmatpush1.msra.mxu0 %v139
  %415 = vmatprep.subr.mxu0 0.0
  %416 = vmatpush1.msra.mxu0 %v138
  %417 = vmatprep.subr.mxu0 0.0
  %418 = vmatpush2.msra.mxu0 0.0
  %419 = vmatprep.subr.mxu0 0.0
  %420 = vmatpush2.msra.mxu0 0.0
  %421 = vmatprep.subr.mxu0 0.0
  %422 = vmatpush2.msra.mxu0 0.0
  %423 = vmatprep.subr.mxu0 0.0
  %424 = vmatpush2.msra.mxu0 0.0
  %425 = vmatprep.subr.mxu0 0.0
  %426 = vmatpush2.msra.mxu0 0.0
  %427 = vmatprep.subr.mxu0 0.0
  %428 = vmatpush2.msra.mxu0 0.0
  %429 = vmatprep.subr.mxu0 0.0
  %430 = vmatpush2.msra.mxu0 0.0
  %431 = vmatprep.subr.mxu0 0.0
  %432 = vmatpush2.msra.mxu0 0.0
  %433 = vmatprep.subr.mxu0 0.0
  %434 = vmatpush2.msra.mxu0 0.0
  %435 = vmatprep.subr.mxu0 0.0
  %436 = vmatpush2.msra.mxu0 0.0
  %437 = vmatprep.subr.mxu0 0.0
  %438 = vmatpush2.msra.mxu0 0.0
  %439 = vmatprep.subr.mxu0 0.0
  %440 = vmatpush2.msra.mxu0 0.0
  %441 = vmatprep.subr.mxu0 0.0
  %442 = vmatpush2.msra.mxu0 0.0
  %443 = vmatprep.subr.mxu0 0.0
  %444 = vmatpush2.msra.mxu0 0.0
  %445 = vmatprep.subr.mxu0 0.0
  %446 = vmatpush2.msra.mxu0 0.0
  %447 = vmatprep.subr.mxu0 0.0
  %448 = vmatpush2.msra.mxu0 0.0
  %449 = vmatprep.mubr.f32.mxu0 0.0
  %450 = vmatmul.mubr.f32.gmra.mxu0 %v383
  %v451 = vpop.f32.mrf.mxu0
  %v452 = vadd.f32 0.0, %v451
  %v453 = vpop.f32.mrf.mxu0
  %454 = vdwg.mxu0
  %v456 = vrot.slane %v452, 5
  %v458 = vadd.f32 %v135, %v456
  %v459 = vxor.u32 %v458, 2147483648
  %v460 = vmul.f32 %v459, 1.442695
  %v461 = vpow.pop %v460
  %v462 = vadd.f32 %v461, 1.0
  %v463 = vrcp.pop %v462
  %v464 = vmul.f32 1.0, %v463
  %v466 = vrot.slane %v372, 7
  %v468 = vmul.f32 %v464, %v466
  %v469 = vmul.f32 %v464, 2.0
  %v470 = vsub.f32 %v469, 1.0
  %472 = vrot.lane.b32.xlu0 %v470, 64
  %v473 = vpop.permute.xlu0 %472
  %v475 = vmul.f32 %v464, %v473
  %477 = vrot.lane.b32.xlu0 %v475, 32
  %v478 = vpop.permute.xlu0 %477
  %v480 = vadd.f32 %v468, %v478
  %v481 = vtanh.pop %v480
  %483 = vrot.lane.b32.xlu0 %v481, 64
  %v484 = vpop.permute.xlu0 %483
  %v486 = vmul.f32 %v464, %v484
  %v488 = vrot.slane %v486, 3
  %489 = vrot.lane.b32.xlu0 %v488, 32
  %v490 = vpop.permute.xlu0 %489
  %v491 = vsel %vm164, %v490, 0
  %493 = vmatprep.subr.mxu0 0.0
  %494 = vmatpush1.msra.mxu0 0.0
  %495 = vmatprep.subr.mxu0 0.0
  %496 = vmatpush1.msra.mxu0 0.0
  %497 = vmatprep.subr.mxu0 0.0
  %498 = vmatpush1.msra.mxu0 0.0
  %499 = vmatprep.subr.mxu0 0.0
  %500 = vmatpush1.msra.mxu0 0.0
  %501 = vmatprep.subr.mxu0 0.0
  %502 = vmatpush1.msra.mxu0 0.0
  %503 = vmatprep.subr.mxu0 0.0
  %504 = vmatpush1.msra.mxu0 0.0
  %505 = vmatprep.subr.mxu0 0.0
  %506 = vmatpush1.msra.mxu0 0.0
  %507 = vmatprep.subr.mxu0 0.0
  %508 = vmatpush1.msra.mxu0 0.0
  %509 = vmatprep.subr.mxu0 0.0
  %510 = vmatpush1.msra.mxu0 0.0
  %511 = vmatprep.subr.mxu0 0.0
  %512 = vmatpush1.msra.mxu0 0.0
  %513 = vmatprep.subr.mxu0 0.0
  %514 = vmatpush1.msra.mxu0 0.0
  %515 = vmatprep.subr.mxu0 0.0
  %516 = vmatpush1.msra.mxu0 0.0
  %517 = vmatprep.subr.mxu0 0.0
  %518 = vmatpush1.msra.mxu0 %v141
  %519 = vmatprep.subr.mxu0 0.0
  %520 = vmatpush1.msra.mxu0 %v140
  %521 = vmatprep.subr.mxu0 0.0
  %522 = vmatpush1.msra.mxu0 %v139
  %523 = vmatprep.subr.mxu0 0.0
  %524 = vmatpush1.msra.mxu0 %v138
  %525 = vmatprep.subr.mxu0 0.0
  %526 = vmatpush2.msra.mxu0 0.0
  %527 = vmatprep.subr.mxu0 0.0
  %528 = vmatpush2.msra.mxu0 0.0
  %529 = vmatprep.subr.mxu0 0.0
  %530 = vmatpush2.msra.mxu0 0.0
  %531 = vmatprep.subr.mxu0 0.0
  %532 = vmatpush2.msra.mxu0 0.0
  %533 = vmatprep.subr.mxu0 0.0
  %534 = vmatpush2.msra.mxu0 0.0
  %535 = vmatprep.subr.mxu0 0.0
  %536 = vmatpush2.msra.mxu0 0.0
  %537 = vmatprep.subr.mxu0 0.0
  %538 = vmatpush2.msra.mxu0 0.0
  %539 = vmatprep.subr.mxu0 0.0
  %540 = vmatpush2.msra.mxu0 0.0
  %541 = vmatprep.subr.mxu0 0.0
  %542 = vmatpush2.msra.mxu0 0.0
  %543 = vmatprep.subr.mxu0 0.0
  %544 = vmatpush2.msra.mxu0 0.0
  %545 = vmatprep.subr.mxu0 0.0
  %546 = vmatpush2.msra.mxu0 0.0
  %547 = vmatprep.subr.mxu0 0.0
  %548 = vmatpush2.msra.mxu0 0.0
  %549 = vmatprep.subr.mxu0 0.0
  %550 = vmatpush2.msra.mxu0 0.0
  %551 = vmatprep.subr.mxu0 0.0
  %552 = vmatpush2.msra.mxu0 0.0
  %553 = vmatprep.subr.mxu0 0.0
  %554 = vmatpush2.msra.mxu0 0.0
  %555 = vmatprep.subr.mxu0 0.0
  %556 = vmatpush2.msra.mxu0 0.0
  %557 = vmatprep.mubr.f32.mxu0 0.0
  %558 = vmatmul.mubr.f32.gmra.mxu0 %v491
  %v559 = vpop.f32.mrf.mxu0
  %v560 = vadd.f32 0.0, %v559
  %v561 = vpop.f32.mrf.mxu0
  %562 = vdwg.mxu0
  %v564 = vrot.slane %v560, 4
  %v566 = vadd.f32 %v135, %v564
  %v567 = vxor.u32 %v566, 2147483648
  %v568 = vmul.f32 %v567, 1.442695
  %v569 = vpow.pop %v568
  %v570 = vadd.f32 %v569, 1.0
  %v571 = vrcp.pop %v570
  %v572 = vmul.f32 1.0, %v571
  %v574 = vrot.slane %v480, 7
  %v576 = vmul.f32 %v572, %v574
  %v577 = vmul.f32 %v572, 2.0
  %v578 = vsub.f32 %v577, 1.0
  %580 = vrot.lane.b32.xlu0 %v578, 64
  %v581 = vpop.permute.xlu0 %580
  %v583 = vmul.f32 %v572, %v581
  %585 = vrot.lane.b32.xlu0 %v583, 32
  %v586 = vpop.permute.xlu0 %585
  %v588 = vadd.f32 %v576, %v586
  %v589 = vtanh.pop %v588
  %591 = vrot.lane.b32.xlu0 %v589, 64
  %v592 = vpop.permute.xlu0 %591
  %v594 = vmul.f32 %v572, %v592
  %v596 = vrot.slane %v594, 4
  %597 = vrot.lane.b32.xlu0 %v596, 32
  %v598 = vpop.permute.xlu0 %597
  %v599 = vsel %vm164, %v598, 0
  %601 = vmatprep.subr.mxu0 0.0
  %602 = vmatpush1.msra.mxu0 0.0
  %603 = vmatprep.subr.mxu0 0.0
  %604 = vmatpush1.msra.mxu0 0.0
  %605 = vmatprep.subr.mxu0 0.0
  %606 = vmatpush1.msra.mxu0 0.0
  %607 = vmatprep.subr.mxu0 0.0
  %608 = vmatpush1.msra.mxu0 0.0
  %609 = vmatprep.subr.mxu0 0.0
  %610 = vmatpush1.msra.mxu0 0.0
  %611 = vmatprep.subr.mxu0 0.0
  %612 = vmatpush1.msra.mxu0 0.0
  %613 = vmatprep.subr.mxu0 0.0
  %614 = vmatpush1.msra.mxu0 0.0
  %615 = vmatprep.subr.mxu0 0.0
  %616 = vmatpush1.msra.mxu0 0.0
  %617 = vmatprep.subr.mxu0 0.0
  %618 = vmatpush1.msra.mxu0 0.0
  %619 = vmatprep.subr.mxu0 0.0
  %620 = vmatpush1.msra.mxu0 0.0
  %621 = vmatprep.subr.mxu0 0.0
  %622 = vmatpush1.msra.mxu0 0.0
  %623 = vmatprep.subr.mxu0 0.0
  %624 = vmatpush1.msra.mxu0 0.0
  %625 = vmatprep.subr.mxu0 0.0
  %626 = vmatpush1.msra.mxu0 %v141
  %627 = vmatprep.subr.mxu0 0.0
  %628 = vmatpush1.msra.mxu0 %v140
  %629 = vmatprep.subr.mxu0 0.0
  %630 = vmatpush1.msra.mxu0 %v139
  %631 = vmatprep.subr.mxu0 0.0
  %632 = vmatpush1.msra.mxu0 %v138
  %633 = vmatprep.subr.mxu0 0.0
  %634 = vmatpush2.msra.mxu0 0.0
  %635 = vmatprep.subr.mxu0 0.0
  %636 = vmatpush2.msra.mxu0 0.0
  %637 = vmatprep.subr.mxu0 0.0
  %638 = vmatpush2.msra.mxu0 0.0
  %639 = vmatprep.subr.mxu0 0.0
  %640 = vmatpush2.msra.mxu0 0.0
  %641 = vmatprep.subr.mxu0 0.0
  %642 = vmatpush2.msra.mxu0 0.0
  %643 = vmatprep.subr.mxu0 0.0
  %644 = vmatpush2.msra.mxu0 0.0
  %645 = vmatprep.subr.mxu0 0.0
  %646 = vmatpush2.msra.mxu0 0.0
  %647 = vmatprep.subr.mxu0 0.0
  %648 = vmatpush2.msra.mxu0 0.0
  %649 = vmatprep.subr.mxu0 0.0
  %650 = vmatpush2.msra.mxu0 0.0
  %651 = vmatprep.subr.mxu0 0.0
  %652 = vmatpush2.msra.mxu0 0.0
  %653 = vmatprep.subr.mxu0 0.0
  %654 = vmatpush2.msra.mxu0 0.0
  %655 = vmatprep.subr.mxu0 0.0
  %656 = vmatpush2.msra.mxu0 0.0
  %657 = vmatprep.subr.mxu0 0.0
  %658 = vmatpush2.msra.mxu0 0.0
  %659 = vmatprep.subr.mxu0 0.0
  %660 = vmatpush2.msra.mxu0 0.0
  %661 = vmatprep.subr.mxu0 0.0
  %662 = vmatpush2.msra.mxu0 0.0
  %663 = vmatprep.subr.mxu0 0.0
  %664 = vmatpush2.msra.mxu0 0.0
  %665 = vmatprep.mubr.f32.mxu0 0.0
  %666 = vmatmul.mubr.f32.gmra.mxu0 %v599
  %v667 = vpop.f32.mrf.mxu0
  %v668 = vadd.f32 0.0, %v667
  %v669 = vpop.f32.mrf.mxu0
  %670 = vdwg.mxu0
  %v672 = vrot.slane %v668, 3
  %v674 = vadd.f32 %v135, %v672
  %v675 = vxor.u32 %v674, 2147483648
  %v676 = vmul.f32 %v675, 1.442695
  %v677 = vpow.pop %v676
  %v678 = vadd.f32 %v677, 1.0
  %v679 = vrcp.pop %v678
  %v680 = vmul.f32 1.0, %v679
  %v682 = vrot.slane %v588, 7
  %v684 = vmul.f32 %v680, %v682
  %v685 = vmul.f32 %v680, 2.0
  %v686 = vsub.f32 %v685, 1.0
  %688 = vrot.lane.b32.xlu0 %v686, 64
  %v689 = vpop.permute.xlu0 %688
  %v691 = vmul.f32 %v680, %v689
  %693 = vrot.lane.b32.xlu0 %v691, 32
  %v694 = vpop.permute.xlu0 %693
  %v696 = vadd.f32 %v684, %v694
  %v697 = vtanh.pop %v696
  %699 = vrot.lane.b32.xlu0 %v697, 64
  %v700 = vpop.permute.xlu0 %699
  %v702 = vmul.f32 %v680, %v700
  %v704 = vrot.slane %v702, 5
  %705 = vrot.lane.b32.xlu0 %v704, 32
  %v706 = vpop.permute.xlu0 %705
  %v707 = vsel %vm164, %v706, 0
  %709 = vmatprep.subr.mxu0 0.0
  %710 = vmatpush1.msra.mxu0 0.0
  %711 = vmatprep.subr.mxu0 0.0
  %712 = vmatpush1.msra.mxu0 0.0
  %713 = vmatprep.subr.mxu0 0.0
  %714 = vmatpush1.msra.mxu0 0.0
  %715 = vmatprep.subr.mxu0 0.0
  %716 = vmatpush1.msra.mxu0 0.0
  %717 = vmatprep.subr.mxu0 0.0
  %718 = vmatpush1.msra.mxu0 0.0
  %719 = vmatprep.subr.mxu0 0.0
  %720 = vmatpush1.msra.mxu0 0.0
  %721 = vmatprep.subr.mxu0 0.0
  %722 = vmatpush1.msra.mxu0 0.0
  %723 = vmatprep.subr.mxu0 0.0
  %724 = vmatpush1.msra.mxu0 0.0
  %725 = vmatprep.subr.mxu0 0.0
  %726 = vmatpush1.msra.mxu0 0.0
  %727 = vmatprep.subr.mxu0 0.0
  %728 = vmatpush1.msra.mxu0 0.0
  %729 = vmatprep.subr.mxu0 0.0
  %730 = vmatpush1.msra.mxu0 0.0
  %731 = vmatprep.subr.mxu0 0.0
  %732 = vmatpush1.msra.mxu0 0.0
  %733 = vmatprep.subr.mxu0 0.0
  %734 = vmatpush1.msra.mxu0 %v141
  %735 = vmatprep.subr.mxu0 0.0
  %736 = vmatpush1.msra.mxu0 %v140
  %737 = vmatprep.subr.mxu0 0.0
  %738 = vmatpush1.msra.mxu0 %v139
  %739 = vmatprep.subr.mxu0 0.0
  %740 = vmatpush1.msra.mxu0 %v138
  %741 = vmatprep.subr.mxu0 0.0
  %742 = vmatpush2.msra.mxu0 0.0
  %743 = vmatprep.subr.mxu0 0.0
  %744 = vmatpush2.msra.mxu0 0.0
  %745 = vmatprep.subr.mxu0 0.0
  %746 = vmatpush2.msra.mxu0 0.0
  %747 = vmatprep.subr.mxu0 0.0
  %748 = vmatpush2.msra.mxu0 0.0
  %749 = vmatprep.subr.mxu0 0.0
  %750 = vmatpush2.msra.mxu0 0.0
  %751 = vmatprep.subr.mxu0 0.0
  %752 = vmatpush2.msra.mxu0 0.0
  %753 = vmatprep.subr.mxu0 0.0
  %754 = vmatpush2.msra.mxu0 0.0
  %755 = vmatprep.subr.mxu0 0.0
  %756 = vmatpush2.msra.mxu0 0.0
  %757 = vmatprep.subr.mxu0 0.0
  %758 = vmatpush2.msra.mxu0 0.0
  %759 = vmatprep.subr.mxu0 0.0
  %760 = vmatpush2.msra.mxu0 0.0
  %761 = vmatprep.subr.mxu0 0.0
  %762 = vmatpush2.msra.mxu0 0.0
  %763 = vmatprep.subr.mxu0 0.0
  %764 = vmatpush2.msra.mxu0 0.0
  %765 = vmatprep.subr.mxu0 0.0
  %766 = vmatpush2.msra.mxu0 0.0
  %767 = vmatprep.subr.mxu0 0.0
  %768 = vmatpush2.msra.mxu0 0.0
  %769 = vmatprep.subr.mxu0 0.0
  %770 = vmatpush2.msra.mxu0 0.0
  %771 = vmatprep.subr.mxu0 0.0
  %772 = vmatpush2.msra.mxu0 0.0
  %773 = vmatprep.mubr.f32.mxu0 0.0
  %774 = vmatmul.mubr.f32.gmra.mxu0 %v707
  %v775 = vpop.f32.mrf.mxu0
  %v776 = vadd.f32 0.0, %v775
  %v777 = vpop.f32.mrf.mxu0
  %778 = vdwg.mxu0
  %v780 = vrot.slane %v776, 2
  %v782 = vadd.f32 %v135, %v780
  %v783 = vxor.u32 %v782, 2147483648
  %v784 = vmul.f32 %v783, 1.442695
  %v785 = vpow.pop %v784
  %v786 = vadd.f32 %v785, 1.0
  %v787 = vrcp.pop %v786
  %v788 = vmul.f32 1.0, %v787
  %v790 = vrot.slane %v696, 7
  %v792 = vmul.f32 %v788, %v790
  %v793 = vmul.f32 %v788, 2.0
  %v794 = vsub.f32 %v793, 1.0
  %796 = vrot.lane.b32.xlu0 %v794, 64
  %v797 = vpop.permute.xlu0 %796
  %v799 = vmul.f32 %v788, %v797
  %801 = vrot.lane.b32.xlu0 %v799, 32
  %v802 = vpop.permute.xlu0 %801
  %v804 = vadd.f32 %v792, %v802
  %v805 = vtanh.pop %v804
  %807 = vrot.lane.b32.xlu0 %v805, 64
  %v808 = vpop.permute.xlu0 %807
  %v810 = vmul.f32 %v788, %v808
  %v812 = vrot.slane %v810, 6
  %813 = vrot.lane.b32.xlu0 %v812, 32
  %v814 = vpop.permute.xlu0 %813
  %v815 = vsel %vm164, %v814, 0
  %817 = vmatprep.subr.mxu0 0.0
  %818 = vmatpush1.msra.mxu0 0.0
  %819 = vmatprep.subr.mxu0 0.0
  %820 = vmatpush1.msra.mxu0 0.0
  %821 = vmatprep.subr.mxu0 0.0
  %822 = vmatpush1.msra.mxu0 0.0
  %823 = vmatprep.subr.mxu0 0.0
  %824 = vmatpush1.msra.mxu0 0.0
  %825 = vmatprep.subr.mxu0 0.0
  %826 = vmatpush1.msra.mxu0 0.0
  %827 = vmatprep.subr.mxu0 0.0
  %828 = vmatpush1.msra.mxu0 0.0
  %829 = vmatprep.subr.mxu0 0.0
  %830 = vmatpush1.msra.mxu0 0.0
  %831 = vmatprep.subr.mxu0 0.0
  %832 = vmatpush1.msra.mxu0 0.0
  %833 = vmatprep.subr.mxu0 0.0
  %834 = vmatpush1.msra.mxu0 0.0
  %835 = vmatprep.subr.mxu0 0.0
  %836 = vmatpush1.msra.mxu0 0.0
  %837 = vmatprep.subr.mxu0 0.0
  %838 = vmatpush1.msra.mxu0 0.0
  %839 = vmatprep.subr.mxu0 0.0
  %840 = vmatpush1.msra.mxu0 0.0
  %841 = vmatprep.subr.mxu0 0.0
  %842 = vmatpush1.msra.mxu0 %v141
  %843 = vmatprep.subr.mxu0 0.0
  %844 = vmatpush1.msra.mxu0 %v140
  %845 = vmatprep.subr.mxu0 0.0
  %846 = vmatpush1.msra.mxu0 %v139
  %847 = vmatprep.subr.mxu0 0.0
  %848 = vmatpush1.msra.mxu0 %v138
  %849 = vmatprep.subr.mxu0 0.0
  %850 = vmatpush2.msra.mxu0 0.0
  %851 = vmatprep.subr.mxu0 0.0
  %852 = vmatpush2.msra.mxu0 0.0
  %853 = vmatprep.subr.mxu0 0.0
  %854 = vmatpush2.msra.mxu0 0.0
  %855 = vmatprep.subr.mxu0 0.0
  %856 = vmatpush2.msra.mxu0 0.0
  %857 = vmatprep.subr.mxu0 0.0
  %858 = vmatpush2.msra.mxu0 0.0
  %859 = vmatprep.subr.mxu0 0.0
  %860 = vmatpush2.msra.mxu0 0.0
  %861 = vmatprep.subr.mxu0 0.0
  %862 = vmatpush2.msra.mxu0 0.0
  %863 = vmatprep.subr.mxu0 0.0
  %864 = vmatpush2.msra.mxu0 0.0
  %865 = vmatprep.subr.mxu0 0.0
  %866 = vmatpush2.msra.mxu0 0.0
  %867 = vmatprep.subr.mxu0 0.0
  %868 = vmatpush2.msra.mxu0 0.0
  %869 = vmatprep.subr.mxu0 0.0
  %870 = vmatpush2.msra.mxu0 0.0
  %871 = vmatprep.subr.mxu0 0.0
  %872 = vmatpush2.msra.mxu0 0.0
  %873 = vmatprep.subr.mxu0 0.0
  %874 = vmatpush2.msra.mxu0 0.0
  %875 = vmatprep.subr.mxu0 0.0
  %876 = vmatpush2.msra.mxu0 0.0
  %877 = vmatprep.subr.mxu0 0.0
  %878 = vmatpush2.msra.mxu0 0.0
  %879 = vmatprep.subr.mxu0 0.0
  %880 = vmatpush2.msra.mxu0 0.0
  %881 = vmatprep.mubr.f32.mxu0 0.0
  %882 = vmatmul.mubr.f32.gmra.mxu0 %v815
  %v883 = vpop.f32.mrf.mxu0
  %v884 = vadd.f32 0.0, %v883
  %v885 = vpop.f32.mrf.mxu0
  %886 = vdwg.mxu0
  %v888 = vrot.slane %v884, 1
  %v890 = vadd.f32 %v135, %v888
  %v891 = vxor.u32 %v890, 2147483648
  %v892 = vmul.f32 %v891, 1.442695
  %v893 = vpow.pop %v892
  %v894 = vadd.f32 %v893, 1.0
  %v895 = vrcp.pop %v894
  %v896 = vmul.f32 1.0, %v895
  %v898 = vrot.slane %v804, 7
  %v900 = vmul.f32 %v896, %v898
  %v901 = vmul.f32 %v896, 2.0
  %v902 = vsub.f32 %v901, 1.0
  %904 = vrot.lane.b32.xlu0 %v902, 64
  %v905 = vpop.permute.xlu0 %904
  %v907 = vmul.f32 %v896, %v905
  %909 = vrot.lane.b32.xlu0 %v907, 32
  %v910 = vpop.permute.xlu0 %909
  %v912 = vadd.f32 %v900, %v910
  %v913 = vtanh.pop %v912
  %915 = vrot.lane.b32.xlu0 %v913, 64
  %v916 = vpop.permute.xlu0 %915
  %v918 = vmul.f32 %v896, %v916
  %v920 = vadd.f32 %v160, %v272
  %v922 = vadd.f32 %v920, %v380
  %v924 = vadd.f32 %v922, %v488
  %v926 = vadd.f32 %v924, %v596
  %v928 = vadd.f32 %v926, %v704
  %v930 = vadd.f32 %v928, %v812
  %v932 = vrot.slane %v918, 7
  %v934 = vadd.f32 %v930, %v932
  %v935 = vmul.f32 %v934, 0.125
  %v936 = vsub.f32 %v160, %v935
  %v937 = vmul.f32 %v936, %v936
  %v939 = vrot.slane %v935, 7
  %v941 = vsub.f32 %v270, %v939
  %v942 = vmul.f32 %v941, %v941
  %v944 = vrot.slane %v942, 1
  %v946 = vadd.f32 %v937, %v944
  %v947 = vrot.slane %v935, 6
  %v949 = vsub.f32 %v378, %v947
  %v950 = vmul.f32 %v949, %v949
  %v952 = vrot.slane %v950, 2
  %v954 = vadd.f32 %v946, %v952
  %v955 = vrot.slane %v935, 5
  %v957 = vsub.f32 %v486, %v955
  %v958 = vmul.f32 %v957, %v957
  %v960 = vrot.slane %v958, 3
  %v962 = vadd.f32 %v954, %v960
  %v963 = vrot.slane %v935, 4
  %v965 = vsub.f32 %v594, %v963
  %v966 = vmul.f32 %v965, %v965
  %v968 = vrot.slane %v966, 4
  %v970 = vadd.f32 %v962, %v968
  %v971 = vrot.slane %v935, 3
  %v973 = vsub.f32 %v702, %v971
  %v974 = vmul.f32 %v973, %v973
  %v976 = vrot.slane %v974, 5
  %v978 = vadd.f32 %v970, %v976
  %v979 = vrot.slane %v935, 2
  %v981 = vsub.f32 %v810, %v979
  %v982 = vmul.f32 %v981, %v981
  %v984 = vrot.slane %v982, 6
  %v986 = vadd.f32 %v978, %v984
  %v987 = vrot.slane %v935, 1
  %v989 = vsub.f32 %v918, %v987
  %v990 = vmul.f32 %v989, %v989
  %v992 = vrot.slane %v990, 7
  %v994 = vadd.f32 %v986, %v992
  %v995 = vmul.f32 %v994, 0.125
  %v996 = vadd.f32 %v995, 1e-05
  %v997 = vrsqrt.pop %v996
  %v999 = vlaneseq
  %v1000 = vshrl.u32 %v999, 7
  %v1001 = vsub.s32 0, %v1000
  %v1002 = vrot.slane %v27, %v1001
  %1003 = vrot.lane.b32.xlu0 %v1002, 96
  %v1004 = vpop.permute.xlu0 %1003
  %v1006 = vmul.f32 %v997, %v1004
  %v1007 = vmul.f32 %v935, %v1006
  %v1010 = vunpack.c.l.s4 1966171168
  %v1011 = vunpack.c.0.s8 %v1010
  %v1012 = vlaneseq
  %v1013 = vshrl.u32 %v1012, 7
  %v1014 = vsub.s32 %v1011, %v1013
  %v1015 = vrot.slane %v1007, %v1014
  %v1017 = vunpack.c.l.s4 1966171168
  %v1018 = vunpack.c.0.s8 %v1017
  %v1019 = vlaneseq
  %v1020 = vshrl.u32 %v1019, 7
  %v1021 = vsub.s32 %v1018, %v1020
  %v1022 = vrot.slane %v1015, %v1021
  %1023 = vrot.lane.b32.xlu0 %v1022, 32
  %v1024 = vpop.permute.xlu0 %1023
  %v1026 = vsub.f32 %v28, %v1024
  %v1027 = vmul.f32 %v160, %v1006
  %v1029 = vlaneseq
  %v1030 = vshrl.u32 %v1029, 7
  %v1031 = vsub.s32 0, %v1030
  %v1032 = vrot.slane %v1026, %v1031
  %1033 = vrot.lane.b32.xlu0 %v1032, 96
  %v1034 = vpop.permute.xlu0 %1033
  %v1036 = vadd.f32 %v1027, %v1034
  %1038 = vrot.lane.b32.xlu0 %v1036, 32
  %v1039 = vpop.permute.xlu0 %1038
  %vm1041 = vcmask 253952
  %1042 = vst.msk [vmem:[#allocation2] sm:$0x1] %vm1041, %v1039
  %v1044 = vrot.slane %v1006, 7
  %v1046 = vmul.f32 %v270, %v1044
  %v1047 = vadd.f32 %v1046, %v1034
  %1049 = vrot.lane.b32.xlu0 %v1047, 32
  %v1050 = vpop.permute.xlu0 %1049
  %vm1052 = vcmask 254977
  %1053 = vst.msk [vmem:[#allocation2] sm:$0x2] %vm1052, %v1050
  %v1054 = vrot.slane %v1006, 6
  %v1056 = vmul.f32 %v378, %v1054
  %v1057 = vadd.f32 %v1056, %v1034
  %1059 = vrot.lane.b32.xlu0 %v1057, 32
  %v1060 = vpop.permute.xlu0 %1059
  %vm1062 = vcmask 256002
  %1063 = vst.msk [vmem:[#allocation2] sm:$0x4] %vm1062, %v1060
  %v1064 = vrot.slane %v1006, 5
  %v1066 = vmul.f32 %v486, %v1064
  %v1067 = vadd.f32 %v1066, %v1034
  %1069 = vrot.lane.b32.xlu0 %v1067, 32
  %v1070 = vpop.permute.xlu0 %1069
  %vm1072 = vcmask 257027
  %1073 = vst.msk [vmem:[#allocation2] sm:$0x8] %vm1072, %v1070
  %v1074 = vrot.slane %v1006, 4
  %v1076 = vmul.f32 %v594, %v1074
  %v1077 = vadd.f32 %v1076, %v1034
  %1079 = vrot.lane.b32.xlu0 %v1077, 32
  %v1080 = vpop.permute.xlu0 %1079
  %vm1082 = vcmask 258052
  %1083 = vst.msk [vmem:[#allocation2] sm:$0x10] %vm1082, %v1080
  %v1084 = vrot.slane %v1006, 3
  %v1086 = vmul.f32 %v702, %v1084
  %v1087 = vadd.f32 %v1086, %v1034
  %1089 = vrot.lane.b32.xlu0 %v1087, 32
  %v1090 = vpop.permute.xlu0 %1089
  %vm1092 = vcmask 259077
  %1093 = vst.msk [vmem:[#allocation2] sm:$0x20] %vm1092, %v1090
  %v1094 = vrot.slane %v1006, 2
  %v1096 = vmul.f32 %v810, %v1094
  %v1097 = vadd.f32 %v1096, %v1034
  %1099 = vrot.lane.b32.xlu0 %v1097, 32
  %v1100 = vpop.permute.xlu0 %1099
  %vm1102 = vcmask 260102
  %1103 = vst.msk [vmem:[#allocation2] sm:$0x40] %vm1102, %v1100
  %v1104 = vrot.slane %v1006, 1
  %v1106 = vmul.f32 %v918, %v1104
  %v1107 = vadd.f32 %v1106, %v1034
  %1109 = vrot.lane.b32.xlu0 %v1107, 32
  %v1110 = vpop.permute.xlu0 %1109
  %vm1112 = vcmask 261127
  %1113 = vst.msk [vmem:[#allocation2] sm:$0x80] %vm1112, %v1110
  %v1114 = vld [vmem:[#allocation2] sm:$0xff]
  %v1115 = vld [vmem:[%s4] sm:$0xff]
  %v1116 = vld [vmem:[%s4 + $0x8] sm:$0xff]
  %v1117 = vld [vmem:[%s4 + $0x10] sm:$0xff]
  %v1118 = vld [vmem:[%s4 + $0x18] sm:$0xff]
  %v1120 = vlaneseq
  %v1121 = vshrl.u32 %v1120, 7
  %v1122 = vsub.s32 0, %v1121
  %v1123 = vrot.slane %v29, %v1122
  %v1126 = vsel %vm164, %v1114, 0
  %1128 = vmatprep.subr.mxu0 0.0
  %1129 = vmatpush1.msra.mxu0 0.0
  %1130 = vmatprep.subr.mxu0 0.0
  %1131 = vmatpush1.msra.mxu0 0.0
  %1132 = vmatprep.subr.mxu0 0.0
  %1133 = vmatpush1.msra.mxu0 0.0
  %1134 = vmatprep.subr.mxu0 0.0
  %1135 = vmatpush1.msra.mxu0 0.0
  %1136 = vmatprep.subr.mxu0 0.0
  %1137 = vmatpush1.msra.mxu0 0.0
  %1138 = vmatprep.subr.mxu0 0.0
  %1139 = vmatpush1.msra.mxu0 0.0
  %1140 = vmatprep.subr.mxu0 0.0
  %1141 = vmatpush1.msra.mxu0 0.0
  %1142 = vmatprep.subr.mxu0 0.0
  %1143 = vmatpush1.msra.mxu0 0.0
  %1144 = vmatprep.subr.mxu0 0.0
  %1145 = vmatpush1.msra.mxu0 0.0
  %1146 = vmatprep.subr.mxu0 0.0
  %1147 = vmatpush1.msra.mxu0 0.0
  %1148 = vmatprep.subr.mxu0 0.0
  %1149 = vmatpush1.msra.mxu0 0.0
  %1150 = vmatprep.subr.mxu0 0.0
  %1151 = vmatpush1.msra.mxu0 0.0
  %1152 = vmatprep.subr.mxu0 0.0
  %1153 = vmatpush1.msra.mxu0 %v1118
  %1154 = vmatprep.subr.mxu0 0.0
  %1155 = vmatpush1.msra.mxu0 %v1117
  %1156 = vmatprep.subr.mxu0 0.0
  %1157 = vmatpush1.msra.mxu0 %v1116
  %1158 = vmatprep.subr.mxu0 0.0
  %1159 = vmatpush1.msra.mxu0 %v1115
  %1160 = vmatprep.subr.mxu0 0.0
  %1161 = vmatpush2.msra.mxu0 0.0
  %1162 = vmatprep.subr.mxu0 0.0
  %1163 = vmatpush2.msra.mxu0 0.0
  %1164 = vmatprep.subr.mxu0 0.0
  %1165 = vmatpush2.msra.mxu0 0.0
  %1166 = vmatprep.subr.mxu0 0.0
  %1167 = vmatpush2.msra.mxu0 0.0
  %1168 = vmatprep.subr.mxu0 0.0
  %1169 = vmatpush2.msra.mxu0 0.0
  %1170 = vmatprep.subr.mxu0 0.0
  %1171 = vmatpush2.msra.mxu0 0.0
  %1172 = vmatprep.subr.mxu0 0.0
  %1173 = vmatpush2.msra.mxu0 0.0
  %1174 = vmatprep.subr.mxu0 0.0
  %1175 = vmatpush2.msra.mxu0 0.0
  %1176 = vmatprep.subr.mxu0 0.0
  %1177 = vmatpush2.msra.mxu0 0.0
  %1178 = vmatprep.subr.mxu0 0.0
  %1179 = vmatpush2.msra.mxu0 0.0
  %1180 = vmatprep.subr.mxu0 0.0
  %1181 = vmatpush2.msra.mxu0 0.0
  %1182 = vmatprep.subr.mxu0 0.0
  %1183 = vmatpush2.msra.mxu0 0.0
  %1184 = vmatprep.subr.mxu0 0.0
  %1185 = vmatpush2.msra.mxu0 0.0
  %1186 = vmatprep.subr.mxu0 0.0
  %1187 = vmatpush2.msra.mxu0 0.0
  %1188 = vmatprep.subr.mxu0 0.0
  %1189 = vmatpush2.msra.mxu0 0.0
  %1190 = vmatprep.subr.mxu0 0.0
  %1191 = vmatpush2.msra.mxu0 0.0
  %1192 = vmatprep.mubr.f32.mxu0 0.0
  %1193 = vmatmul.mubr.f32.gmra.mxu0 %v1126
  %v1194 = vpop.f32.mrf.mxu0
  %v1195 = vadd.f32 %v1123, %v1194
  %v1196 = vpop.f32.mrf.mxu0
  %1197 = vdwg.mxu0
  %v1198 = vmax.f32 %v1195, 0.0
  %v1199 = vld [vmem:[%s5] sm:$0xff]
  %v1200 = vld [vmem:[%s5 + $0x8] sm:$0xff]
  %v1201 = vld [vmem:[%s5 + $0x10] sm:$0xff]
  %v1202 = vld [vmem:[%s5 + $0x18] sm:$0xff]
  %v1203 = vld [vmem:[%s5 + $0x20] sm:$0xff]
  %v1204 = vld [vmem:[%s5 + $0x28] sm:$0xff]
  %v1205 = vld [vmem:[%s5 + $0x30] sm:$0xff]
  %v1206 = vld [vmem:[%s5 + $0x38] sm:$0xff]
  %v1208 = vlaneseq
  %v1209 = vshrl.u32 %v1208, 7
  %v1210 = vsub.s32 0, %v1209
  %v1211 = vrot.slane %v30, %v1210
  %vm1213 = vcmask 523264
  %v1215 = vsel %vm1213, %v1198, 0
  %1217 = vmatprep.subr.mxu0 0.0
  %1218 = vmatpush1.msra.mxu0 0.0
  %1219 = vmatprep.subr.mxu0 0.0
  %1220 = vmatpush1.msra.mxu0 0.0
  %1221 = vmatprep.subr.mxu0 0.0
  %1222 = vmatpush1.msra.mxu0 0.0
  %1223 = vmatprep.subr.mxu0 0.0
  %1224 = vmatpush1.msra.mxu0 0.0
  %1225 = vmatprep.subr.mxu0 0.0
  %1226 = vmatpush1.msra.mxu0 0.0
  %1227 = vmatprep.subr.mxu0 0.0
  %1228 = vmatpush1.msra.mxu0 0.0
  %1229 = vmatprep.subr.mxu0 0.0
  %1230 = vmatpush1.msra.mxu0 0.0
  %1231 = vmatprep.subr.mxu0 0.0
  %1232 = vmatpush1.msra.mxu0 0.0
  %1233 = vmatprep.subr.mxu0 0.0
  %1234 = vmatpush1.msra.mxu0 %v1206
  %1235 = vmatprep.subr.mxu0 0.0
  %1236 = vmatpush1.msra.mxu0 %v1205
  %1237 = vmatprep.subr.mxu0 0.0
  %1238 = vmatpush1.msra.mxu0 %v1204
  %1239 = vmatprep.subr.mxu0 0.0
  %1240 = vmatpush1.msra.mxu0 %v1203
  %1241 = vmatprep.subr.mxu0 0.0
  %1242 = vmatpush1.msra.mxu0 %v1202
  %1243 = vmatprep.subr.mxu0 0.0
  %1244 = vmatpush1.msra.mxu0 %v1201
  %1245 = vmatprep.subr.mxu0 0.0
  %1246 = vmatpush1.msra.mxu0 %v1200
  %1247 = vmatprep.subr.mxu0 0.0
  %1248 = vmatpush1.msra.mxu0 %v1199
  %1249 = vmatprep.subr.mxu0 0.0
  %1250 = vmatpush2.msra.mxu0 0.0
  %1251 = vmatprep.subr.mxu0 0.0
  %1252 = vmatpush2.msra.mxu0 0.0
  %1253 = vmatprep.subr.mxu0 0.0
  %1254 = vmatpush2.msra.mxu0 0.0
  %1255 = vmatprep.subr.mxu0 0.0
  %1256 = vmatpush2.msra.mxu0 0.0
  %1257 = vmatprep.subr.mxu0 0.0
  %1258 = vmatpush2.msra.mxu0 0.0
  %1259 = vmatprep.subr.mxu0 0.0
  %1260 = vmatpush2.msra.mxu0 0.0
  %1261 = vmatprep.subr.mxu0 0.0
  %1262 = vmatpush2.msra.mxu0 0.0
  %1263 = vmatprep.subr.mxu0 0.0
  %1264 = vmatpush2.msra.mxu0 0.0
  %1265 = vmatprep.subr.mxu0 0.0
  %1266 = vmatpush2.msra.mxu0 0.0
  %1267 = vmatprep.subr.mxu0 0.0
  %1268 = vmatpush2.msra.mxu0 0.0
  %1269 = vmatprep.subr.mxu0 0.0
  %1270 = vmatpush2.msra.mxu0 0.0
  %1271 = vmatprep.subr.mxu0 0.0
  %1272 = vmatpush2.msra.mxu0 0.0
  %1273 = vmatprep.subr.mxu0 0.0
  %1274 = vmatpush2.msra.mxu0 0.0
  %1275 = vmatprep.subr.mxu0 0.0
  %1276 = vmatpush2.msra.mxu0 0.0
  %1277 = vmatprep.subr.mxu0 0.0
  %1278 = vmatpush2.msra.mxu0 0.0
  %1279 = vmatprep.subr.mxu0 0.0
  %1280 = vmatpush2.msra.mxu0 0.0
  %1281 = vmatprep.mubr.f32.mxu0 0.0
  %1282 = vmatmul.mubr.f32.gmra.mxu0 %v1215
  %v1283 = vpop.f32.mrf.mxu0
  %v1284 = vadd.f32 %v1211, %v1283
  %v1285 = vpop.f32.mrf.mxu0
  %1286 = vdwg.mxu0
  %v1287 = vld [vmem:[%s6] sm:$0xff]
  %v1288 = vmul.f32 %v1284, 0.5
  %v1289 = vmul.f32 %v1288, 1.442695
  %v1290 = vpow.pop %v1289
  %1292 = vrot.lane.b32.xlu0 %v1290, 112
  %v1293 = vpop.permute.xlu0 %1292
  %v1295 = vmul.f32 %v1287, %v1293
  %v1296 = vadd.f32 %v1284, %v1295
  %vm1297 = vcmask 130048
  %1298 = vst.msk [vmem:[%s7] sm:$0xff] %vm1297, %v1296
  %1300 = vrot.lane.b32.xlu0 %v1284, 16
  %v1301 = vpop.permute.xlu0 %1300
  %vm1303 = vcmask 261248
  %1304 = vst.msk [vmem:[%s7] sm:$0xff] %vm1303, %v1301
  %vm1305 = vcmask 392448
  %1306 = vst.msk [vmem:[%s7] sm:$0xff] %vm1305, %v1301
  // Predicated region
  $region30: #{timeseries_encoder2_batched.1} parent=0 // pred_check
    _
  $region31: #{timeseries_encoder2_batched.1} parent=0 // pred_check_branch
    %1308 = sbr.rel (0) target = $region33
  $region32: #{timeseries_encoder2_batched.1} parent=0 // pred_region
    _
  $region33: #{timeseries_encoder2_batched.1} parent=0 // pred_fallthru
    _
  // Predicated region
  $region34: #{timeseries_encoder2_batched.1} parent=0 // pred_check
    _
  $region35: #{timeseries_encoder2_batched.1} parent=0 // pred_check_branch
    %1310 = sbr.rel (0) target = $region37
  $region36: #{timeseries_encoder2_batched.1} parent=0 // pred_region
    _
  $region37: #{timeseries_encoder2_batched.1} parent=0 // pred_fallthru
    _

</llo_original>
